<compile_context>
chip_gen: v5e
topology: v5e:2x2
jax: 0.10.0
libtpu: 0.0.40
codegen_flags: <defaults>
</compile_context>

<pallas_src>
import numpy as np
import jax
import jax.numpy as jnp
from jax import lax
from jax.experimental import pallas as pl
from jax.experimental.pallas import tpu as pltpu

START_TAG = "<START>"
STOP_TAG = "<STOP>"
tag_to_ix = {"O": 0, "B-LOCATION": 1, "I-LOCATION": 2, "B-TIME": 3, "I-TIME": 4,
             START_TAG: 5, STOP_TAG: 6}
TAGSET = len(tag_to_ix)
START_IDX = tag_to_ix[START_TAG]
STOP_IDX = tag_to_ix[STOP_TAG]
NEG = -10000.0


# ----------------------------- Pallas kernel ---------------------------------
def bilstm_crf_kernel(embeds_ref,                 # (T, E)
                      wx_ref,                     # (2E+1, 8H2): [wx_f_fused; wx_b_fused; bias_fused]
                      wh_ref,                     # (2H2, 8H2): block-diag(whf, whb), fused gate layout
                      crf_ref,                    # (2H2+2+2TS, TS): [wtag; btag; transT; trans; stop]
                      feats_ref, path_ref, score_ref, start_ref):
    T, E = embeds_ref.shape
    H2 = wh_ref.shape[0] // 2
    G2 = 2 * H2                                   # width of one fused gate ([fwd | bwd])
    TS = crf_ref.shape[1]
    f32 = jnp.float32

    # ---- hoisted input projections (off the serial recurrence chain) ----
    embeds = embeds_ref[...]
    wx_f = wx_ref[0:E, :]                         # fwd columns live, bwd columns zero
    wx_b = wx_ref[E:2 * E, :]                     # bwd columns live, fwd columns zero
    bias = wx_ref[2 * E:2 * E + 1, :]
    xf = jnp.dot(embeds, wx_f, preferred_element_type=f32) + bias     # (T, 8H2)
    xb = jnp.dot(embeds, wx_b, preferred_element_type=f32)            # (T, 8H2)
    # fused-step t pairs fwd time t with bwd time T-1-t; all adds are off-chain
    zxs = [xf[t:t + 1, :] + xb[T - 1 - t:T - t, :] for t in range(T)]

    wh = wh_ref[...]                              # (2H2, 8H2)

    # ---- fused bidirectional LSTM recurrence: one 128-lane matmul per step ----
    # NOTE: reference init_hidden() returns None on CPU -> PyTorch LSTM uses zero state.
    h = jnp.zeros((1, G2), f32)                   # [hf | hb]
    c = jnp.zeros((1, G2), f32)                   # [cf | cb]
    hs = []
    for t in range(T):
        z = zxs[t] + jnp.dot(h, wh, preferred_element_type=f32)       # (1, 8H2)
        sg = 0.5 * jnp.tanh(0.5 * z) + 0.5        # sigmoid via tanh, full width (1 EUP op)
        th = jnp.tanh(z)                          # full width (1 EUP op)
        i_g = sg[:, 0:G2]                         # fused gate layout: [i | f | g | o], each 2H2 wide
        f_g = sg[:, G2:2 * G2]
        g_g = th[:, 2 * G2:3 * G2]
        o_g = sg[:, 3 * G2:4 * G2]
        c = f_g * c + i_g * g_g
        h = o_g * jnp.tanh(c)
        hs.append(h)

    # ---- hidden2tag: register-resident hidden states, no VMEM scratch ----
    h_fwd = jnp.concatenate(hs, axis=0)[:, 0:H2]         # (T, H2), time order
    h_bwd = jnp.concatenate(hs[::-1], axis=0)[:, H2:G2]  # (T, H2), time order (Python list reversal)
    wtag_f = crf_ref[0:H2, :]
    wtag_b = crf_ref[H2:G2, :]
    btag = crf_ref[G2:G2 + 1, :]
    feats = (jnp.dot(h_fwd, wtag_f, preferred_element_type=f32)
             + jnp.dot(h_bwd, wtag_b, preferred_element_type=f32) + btag)   # (T, TS)
    feats_ref[...] = feats                                # single lane-masked store, once

    # ---- Viterbi max-plus DP with alternating orientation ----
    transT = crf_ref[G2 + 1:G2 + 1 + TS, :]               # transT[prev, next] = trans[next, prev]
    trans = crf_ref[G2 + 1 + TS:G2 + 1 + 2 * TS, :]       # trans[next, prev]
    stop_row = crf_ref[G2 + 1 + 2 * TS:G2 + 2 + 2 * TS, :]  # (1, TS) = trans[STOP, :]

    ii = lax.broadcasted_iota(jnp.int32, (TS, TS), 0)      # sublane index
    jj = lax.broadcasted_iota(jnp.int32, (TS, TS), 1)      # lane index
    diag = ii == jj
    lane_ts = lax.broadcasted_iota(jnp.int32, (1, TS), 1)
    sub_ts = lax.broadcasted_iota(jnp.int32, (TS, 1), 0)

    def row_to_col(row):                                    # (1,TS) -> (TS,1), used off-chain only
        return jnp.sum(jnp.where(diag, row, 0.0), axis=1, keepdims=True)

    # pre-add emissions to the transitions (moves T VPU adds off the serial DP chain)
    pre = []
    for t in range(T):
        frow = feats[t:t + 1, :]
        if t % 2 == 0:
            pre.append(transT + frow)                       # (prev, next) + row over next
        else:
            pre.append(trans + row_to_col(frow))            # (next, prev) + col over next

    fv = jnp.where(sub_ts == START_IDX, 0.0, NEG).astype(f32)   # (TS, 1) column over prev
    bptrs = []                                              # register-resident backpointers
    for t in range(T):
        if t % 2 == 0:                                      # prev on sublanes, next on lanes
            scores = fv + pre[t]                            # (prev, next)
            vmax = jnp.max(scores, axis=0, keepdims=True)   # (1, TS)
            bptrs.append(jnp.min(jnp.where(scores == vmax, ii, TS),
                                 axis=0, keepdims=True))    # (1, TS), first argmax prev
            fv = vmax                                       # row -> next (odd) step
        else:                                               # prev on lanes, next on sublanes
            scores = fv + pre[t]                            # (next, prev)
            vmax = jnp.max(scores, axis=1, keepdims=True)   # (TS, 1)
            bptrs.append(jnp.min(jnp.where(scores == vmax, jj, TS),
                                 axis=1, keepdims=True))    # (TS, 1), first argmax prev
            fv = vmax                                       # col -> next (even) step

    # ---- terminal + in-kernel back-pointer trace-back ----
    if T % 2 == 0:                                          # fv is a column over tags
        term = fv + row_to_col(stop_row)
        score = jnp.max(term, axis=0, keepdims=True)        # (1, 1)
        best = jnp.min(jnp.where(term == score, sub_ts, TS), axis=0, keepdims=True)
    else:                                                   # fv is a row over tags
        term = fv + stop_row
        score = jnp.max(term, axis=1, keepdims=True)
        best = jnp.min(jnp.where(term == score, lane_ts, TS), axis=1, keepdims=True)

    def lookup(bp, idx, t):      # bp[idx] for a traced tag index via one-hot select + reduce
        if t % 2 == 0:           # bp is (1, TS)
            return jnp.sum(jnp.where(lane_ts == idx, bp, 0), axis=1, keepdims=True)
        return jnp.sum(jnp.where(sub_ts == idx, bp, 0), axis=0, keepdims=True)

    path = [None] * T
    path[T - 1] = best
    cur = best
    for t in range(T - 1, 0, -1):
        cur = lookup(bptrs[t], cur, t)
        path[t - 1] = cur
    start = lookup(bptrs[0], cur, 0)                        # must equal START_IDX

    lane_T = lax.broadcasted_iota(jnp.int32, (1, T), 1)
    path_row = jnp.zeros((1, T), jnp.int32)
    for t in range(T):
        path_row = path_row + jnp.where(lane_T == t, path[t], 0)

    path_ref[...] = path_row
    score_ref[...] = score
    start_ref[...] = start


# ----------------------------- wrapper ---------------------------------------
def bilstm_crf_forward(sentence, p):
    """Returns (path_score, best_path, start, feats) like BiLSTM_CRF.forward (+feats)."""
    T = sentence.shape[0]
    H2 = p["W_hh_f"].shape[1]
    E = p["emb"].shape[1]

    # glue: embedding gather (data-dependent gather kept outside the kernel)
    embeds = p["emb"][sentence].astype(jnp.float32)                    # (T, E)

    def fuse_gate_cols(a_f, a_b):
        # a_f/a_b: (..., 4H2) in PyTorch gate order [i,f,g,o] -> (..., 8H2) interleaved
        # fused layout [i_f,i_b, f_f,f_b, g_f,g_b, o_f,o_b], each block H2 wide.
        parts = []
        for g in range(4):
            parts.append(a_f[..., g * H2:(g + 1) * H2])
            parts.append(a_b[..., g * H2:(g + 1) * H2])
        return jnp.concatenate(parts, axis=-1)

    wxf = p["W_ih_f"].T.astype(jnp.float32)                            # (E, 4H2)
    wxb = p["W_ih_b"].T.astype(jnp.float32)
    whf = p["W_hh_f"].T.astype(jnp.float32)                            # (H2, 4H2)
    whb = p["W_hh_b"].T.astype(jnp.float32)
    bf = (p["b_ih_f"] + p["b_hh_f"]).reshape(1, 4 * H2).astype(jnp.float32)
    bb = (p["b_ih_b"] + p["b_hh_b"]).reshape(1, 4 * H2).astype(jnp.float32)

    zx = jnp.zeros((E, 4 * H2), jnp.float32)
    zh = jnp.zeros((H2, 4 * H2), jnp.float32)
    wx_pack = jnp.concatenate([fuse_gate_cols(wxf, zx),                # (E, 8H2) fwd-only cols
                               fuse_gate_cols(zx, wxb),                # (E, 8H2) bwd-only cols
                               fuse_gate_cols(bf, bb)], axis=0)        # (1, 8H2) fused bias
    wh_blk = jnp.concatenate([fuse_gate_cols(whf, zh),                 # rows 0..H2 driven by hf
                              fuse_gate_cols(zh, whb)], axis=0)        # rows H2..2H2 driven by hb

    wtag = p["W_tag"].T.astype(jnp.float32)                            # (2H2, TS): [fwd | bwd] rows
    btag = p["b_tag"].reshape(1, TAGSET).astype(jnp.float32)
    trans = p["transitions"].astype(jnp.float32)                       # (next, prev)
    transT = trans.T                                                   # (prev, next)
    stop_row = trans[STOP_IDX:STOP_IDX + 1, :]
    crf_pack = jnp.concatenate([wtag, btag, transT, trans, stop_row], axis=0)  # (2H2+2+2TS, TS)

    vmem = pl.BlockSpec(memory_space=pltpu.MemorySpace.VMEM)
    feats, path_row, score, start = pl.pallas_call(
        bilstm_crf_kernel,
        out_shape=(
            jax.ShapeDtypeStruct((T, TAGSET), jnp.float32),
            jax.ShapeDtypeStruct((1, T), jnp.int32),
            jax.ShapeDtypeStruct((1, 1), jnp.float32),
            jax.ShapeDtypeStruct((1, 1), jnp.int32),
        ),
        in_specs=[vmem] * 4,
        out_specs=(vmem, vmem, vmem, vmem),
    )(embeds, wx_pack, wh_blk, crf_pack)

    return score[0, 0], path_row[0], start[0, 0], feats


# ----------------------------- pure-numpy reference --------------------------
def ref_forward(sentence, p):
    emb = np.asarray(p["emb"]); x = emb[np.asarray(sentence)]
    T = x.shape[0]
    H2 = np.asarray(p["W_hh_f"]).shape[1]

    def sigm(v):
        return 1.0 / (1.0 + np.exp(-v))

    def run(W_ih, W_hh, b, reverse):
        W_ih = np.asarray(W_ih); W_hh = np.asarray(W_hh); b = np.asarray(b)
        h = np.zeros(H2, np.float32); c = np.zeros(H2, np.float32)
        hs = np.zeros((T, H2), np.float32)
        order = range(T - 1, -1, -1) if reverse else range(T)
        for t in order:
            g = W_ih @ x[t] + W_hh @ h + b
            i = sigm(g[:H2]); f = sigm(g[H2:2 * H2])
            gg = np.tanh(g[2 * H2:3 * H2]); o = sigm(g[3 * H2:])
            c = f * c + i * gg
            h = o * np.tanh(c)
            hs[t] = h
        return hs

    hf = run(p["W_ih_f"], p["W_hh_f"], np.asarray(p["b_ih_f"]) + np.asarray(p["b_hh_f"]), False)
    hb = run(p["W_ih_b"], p["W_hh_b"], np.asarray(p["b_ih_b"]) + np.asarray(p["b_hh_b"]), True)
    hcat = np.concatenate([hf, hb], axis=1)
    feats = hcat @ np.asarray(p["W_tag"]).T + np.asarray(p["b_tag"])

    trans = np.asarray(p["transitions"])
    fv = np.full(TAGSET, -10000.0, np.float32); fv[START_IDX] = 0.0
    bps = []
    for feat in feats:
        bptrs, vvars = [], []
        for nt in range(TAGSET):
            ntv = fv + trans[nt]
            best = int(np.argmax(ntv))
            bptrs.append(best); vvars.append(ntv[best])
        fv = np.array(vvars, np.float32) + feat
        bps.append(bptrs)
    term = fv + trans[STOP_IDX]
    best = int(np.argmax(term)); score = float(term[best])
    path = [best]
    for bptrs in reversed(bps):
        best = bptrs[best]; path.append(best)
    start = path.pop()
    assert start == START_IDX
    path.reverse()
    return feats, score, path


# ----------------------------- main -------------------------------------------
if __name__ == "__main__":
    vocab_size, embedding_dim, hidden_dim, seq_len = 20, 8, 32, 8
    H2 = hidden_dim // 2

    key = jax.random.PRNGKey(0)
    ks = jax.random.split(key, 14)
    p = {
        "emb":     jax.random.normal(ks[0], (vocab_size, embedding_dim), jnp.float32) * 0.5,
        "W_ih_f":  jax.random.normal(ks[1], (4 * H2, embedding_dim), jnp.float32) * 0.3,
        "W_hh_f":  jax.random.normal(ks[2], (4 * H2, H2), jnp.float32) * 0.3,
        "b_ih_f":  jax.random.normal(ks[3], (4 * H2,), jnp.float32) * 0.1,
        "b_hh_f":  jax.random.normal(ks[4], (4 * H2,), jnp.float32) * 0.1,
        "W_ih_b":  jax.random.normal(ks[5], (4 * H2, embedding_dim), jnp.float32) * 0.3,
        "W_hh_b":  jax.random.normal(ks[6], (4 * H2, H2), jnp.float32) * 0.3,
        "b_ih_b":  jax.random.normal(ks[7], (4 * H2,), jnp.float32) * 0.1,
        "b_hh_b":  jax.random.normal(ks[8], (4 * H2,), jnp.float32) * 0.1,
        "W_tag":   jax.random.normal(ks[9], (TAGSET, hidden_dim), jnp.float32) * 0.3,
        "b_tag":   jax.random.normal(ks[10], (TAGSET,), jnp.float32) * 0.1,
    }
    transitions = jax.random.normal(ks[11], (TAGSET, TAGSET), jnp.float32)
    transitions = transitions.at[START_IDX, :].set(-10000.0)
    transitions = transitions.at[:, STOP_IDX].set(-10000.0)
    p["transitions"] = transitions

    sentence = jax.random.randint(ks[12], (seq_len,), 0, vocab_size, dtype=jnp.int32)

    path_score, best_path, start, feats = bilstm_crf_forward(sentence, p)
    jax.block_until_ready((path_score, best_path, start, feats))

    # correctness check against a pure numpy reference of the PyTorch forward
    ref_feats, ref_score, ref_path = ref_forward(np.asarray(sentence), p)
    assert np.allclose(np.asarray(feats), ref_feats, atol=3e-2, rtol=3e-2), "feats mismatch"
    assert int(start) == START_IDX, "viterbi path does not start at <START>"
    assert list(np.asarray(best_path)) == ref_path, "viterbi path mismatch"
    assert abs(float(path_score) - ref_score) < 0.1, "viterbi score mismatch"

    print("KERNEL_OK")
</pallas_src>

<mosaic_0001>
module attributes {stable_mosaic.version = 11 : i64} {
  func.func @bilstm_crf_kernel(%arg0: memref<8x8xf32, #tpu.memory_space<vmem>>, %arg1: memref<17x128xf32, #tpu.memory_space<vmem>>, %arg2: memref<32x128xf32, #tpu.memory_space<vmem>>, %arg3: memref<48x7xf32, #tpu.memory_space<vmem>>, %arg4: memref<8x7xf32, #tpu.memory_space<vmem>>, %arg5: memref<1x8xi32, #tpu.memory_space<vmem>>, %arg6: memref<1x1xf32, #tpu.memory_space<vmem>>, %arg7: memref<1x1xi32, #tpu.memory_space<vmem>>) attributes {dimension_semantics = [], scalar_prefetch = 0 : i64, scratch_operands = 0 : i64, tpu.core_type = #tpu.core_type<tc>} {
    %c0 = arith.constant 0 : index
    %c0_0 = arith.constant 0 : index
    %0 = vector.load %arg0[%c0, %c0_0] : memref<8x8xf32, #tpu.memory_space<vmem>>, vector<8x8xf32>
    %c0_1 = arith.constant 0 : index
    %c0_2 = arith.constant 0 : index
    %1 = vector.load %arg1[%c0_1, %c0_2] : memref<17x128xf32, #tpu.memory_space<vmem>>, vector<8x128xf32>
    %c8 = arith.constant 8 : index
    %c0_3 = arith.constant 0 : index
    %2 = vector.load %arg1[%c8, %c0_3] : memref<17x128xf32, #tpu.memory_space<vmem>>, vector<8x128xf32>
    %c16 = arith.constant 16 : index
    %c0_4 = arith.constant 0 : index
    %3 = vector.load %arg1[%c16, %c0_4] : memref<17x128xf32, #tpu.memory_space<vmem>>, vector<1x128xf32>
    %cst = arith.constant dense<0.000000e+00> : vector<8x128xf32>
    %4 = tpu.matmul %0, %1, %cst {dimension_numbers = #tpu.dot_dimension_numbers<[1], [0], [0], [1], [0, 0, 1, 1], [], []>} : vector<8x8xf32>, vector<8x128xf32>, vector<8x128xf32> -> vector<8x128xf32>
    %5 = vector.broadcast %3 : vector<1x128xf32> to vector<8x128xf32>
    %6 = arith.addf %4, %5 : vector<8x128xf32>
    %cst_5 = arith.constant dense<0.000000e+00> : vector<8x128xf32>
    %7 = tpu.matmul %0, %2, %cst_5 {dimension_numbers = #tpu.dot_dimension_numbers<[1], [0], [0], [1], [0, 0, 1, 1], [], []>} : vector<8x8xf32>, vector<8x128xf32>, vector<8x128xf32> -> vector<8x128xf32>
    %8 = vector.extract_strided_slice %6 {offsets = [0, 0], sizes = [1, 128], strides = [1, 1]} : vector<8x128xf32> to vector<1x128xf32>
    %9 = vector.extract_strided_slice %7 {offsets = [7, 0], sizes = [1, 128], strides = [1, 1]} : vector<8x128xf32> to vector<1x128xf32>
    %10 = arith.addf %8, %9 : vector<1x128xf32>
    %11 = vector.extract_strided_slice %6 {offsets = [1, 0], sizes = [1, 128], strides = [1, 1]} : vector<8x128xf32> to vector<1x128xf32>
    %12 = vector.extract_strided_slice %7 {offsets = [6, 0], sizes = [1, 128], strides = [1, 1]} : vector<8x128xf32> to vector<1x128xf32>
    %13 = arith.addf %11, %12 : vector<1x128xf32>
    %14 = vector.extract_strided_slice %6 {offsets = [2, 0], sizes = [1, 128], strides = [1, 1]} : vector<8x128xf32> to vector<1x128xf32>
    %15 = vector.extract_strided_slice %7 {offsets = [5, 0], sizes = [1, 128], strides = [1, 1]} : vector<8x128xf32> to vector<1x128xf32>
    %16 = arith.addf %14, %15 : vector<1x128xf32>
    %17 = vector.extract_strided_slice %6 {offsets = [3, 0], sizes = [1, 128], strides = [1, 1]} : vector<8x128xf32> to vector<1x128xf32>
    %18 = vector.extract_strided_slice %7 {offsets = [4, 0], sizes = [1, 128], strides = [1, 1]} : vector<8x128xf32> to vector<1x128xf32>
    %19 = arith.addf %17, %18 : vector<1x128xf32>
    %20 = vector.extract_strided_slice %6 {offsets = [4, 0], sizes = [1, 128], strides = [1, 1]} : vector<8x128xf32> to vector<1x128xf32>
    %21 = vector.extract_strided_slice %7 {offsets = [3, 0], sizes = [1, 128], strides = [1, 1]} : vector<8x128xf32> to vector<1x128xf32>
    %22 = arith.addf %20, %21 : vector<1x128xf32>
    %23 = vector.extract_strided_slice %6 {offsets = [5, 0], sizes = [1, 128], strides = [1, 1]} : vector<8x128xf32> to vector<1x128xf32>
    %24 = vector.extract_strided_slice %7 {offsets = [2, 0], sizes = [1, 128], strides = [1, 1]} : vector<8x128xf32> to vector<1x128xf32>
    %25 = arith.addf %23, %24 : vector<1x128xf32>
    %26 = vector.extract_strided_slice %6 {offsets = [6, 0], sizes = [1, 128], strides = [1, 1]} : vector<8x128xf32> to vector<1x128xf32>
    %27 = vector.extract_strided_slice %7 {offsets = [1, 0], sizes = [1, 128], strides = [1, 1]} : vector<8x128xf32> to vector<1x128xf32>
    %28 = arith.addf %26, %27 : vector<1x128xf32>
    %29 = vector.extract_strided_slice %6 {offsets = [7, 0], sizes = [1, 128], strides = [1, 1]} : vector<8x128xf32> to vector<1x128xf32>
    %30 = vector.extract_strided_slice %7 {offsets = [0, 0], sizes = [1, 128], strides = [1, 1]} : vector<8x128xf32> to vector<1x128xf32>
    %31 = arith.addf %29, %30 : vector<1x128xf32>
    %c0_6 = arith.constant 0 : index
    %c0_7 = arith.constant 0 : index
    %32 = vector.load %arg2[%c0_6, %c0_7] : memref<32x128xf32, #tpu.memory_space<vmem>>, vector<32x128xf32>
    %cst_8 = arith.constant 0.000000e+00 : f32
    %33 = vector.broadcast %cst_8 : f32 to vector<1x32xf32>
    %cst_9 = arith.constant 0.000000e+00 : f32
    %34 = vector.broadcast %cst_9 : f32 to vector<1x32xf32>
    %cst_10 = arith.constant dense<0.000000e+00> : vector<1x128xf32>
    %35 = tpu.matmul %33, %32, %cst_10 {dimension_numbers = #tpu.dot_dimension_numbers<[1], [0], [0], [1], [0, 0, 1, 1], [], []>} : vector<1x32xf32>, vector<32x128xf32>, vector<1x128xf32> -> vector<1x128xf32>
    %36 = arith.addf %10, %35 : vector<1x128xf32>
    %cst_11 = arith.constant 5.000000e-01 : f32
    %37 = vector.broadcast %cst_11 : f32 to vector<1x128xf32>
    %38 = arith.mulf %37, %36 : vector<1x128xf32>
    %39 = math.tanh %38 : vector<1x128xf32>
    %cst_12 = arith.constant 5.000000e-01 : f32
    %40 = vector.broadcast %cst_12 : f32 to vector<1x128xf32>
    %41 = arith.mulf %40, %39 : vector<1x128xf32>
    %cst_13 = arith.constant 5.000000e-01 : f32
    %42 = vector.broadcast %cst_13 : f32 to vector<1x128xf32>
    %43 = arith.addf %41, %42 : vector<1x128xf32>
    %44 = math.tanh %36 : vector<1x128xf32>
    %45 = vector.extract_strided_slice %43 {offsets = [0, 0], sizes = [1, 32], strides = [1, 1]} : vector<1x128xf32> to vector<1x32xf32>
    %46 = vector.extract_strided_slice %43 {offsets = [0, 32], sizes = [1, 32], strides = [1, 1]} : vector<1x128xf32> to vector<1x32xf32>
    %47 = vector.extract_strided_slice %44 {offsets = [0, 64], sizes = [1, 32], strides = [1, 1]} : vector<1x128xf32> to vector<1x32xf32>
    %48 = vector.extract_strided_slice %43 {offsets = [0, 96], sizes = [1, 32], strides = [1, 1]} : vector<1x128xf32> to vector<1x32xf32>
    %49 = arith.mulf %46, %34 : vector<1x32xf32>
    %50 = arith.mulf %45, %47 : vector<1x32xf32>
    %51 = arith.addf %49, %50 : vector<1x32xf32>
    %52 = math.tanh %51 : vector<1x32xf32>
    %53 = arith.mulf %48, %52 : vector<1x32xf32>
    %cst_14 = arith.constant dense<0.000000e+00> : vector<1x128xf32>
    %54 = tpu.matmul %53, %32, %cst_14 {dimension_numbers = #tpu.dot_dimension_numbers<[1], [0], [0], [1], [0, 0, 1, 1], [], []>} : vector<1x32xf32>, vector<32x128xf32>, vector<1x128xf32> -> vector<1x128xf32>
    %55 = arith.addf %13, %54 : vector<1x128xf32>
    %cst_15 = arith.constant 5.000000e-01 : f32
    %56 = vector.broadcast %cst_15 : f32 to vector<1x128xf32>
    %57 = arith.mulf %56, %55 : vector<1x128xf32>
    %58 = math.tanh %57 : vector<1x128xf32>
    %cst_16 = arith.constant 5.000000e-01 : f32
    %59 = vector.broadcast %cst_16 : f32 to vector<1x128xf32>
    %60 = arith.mulf %59, %58 : vector<1x128xf32>
    %cst_17 = arith.constant 5.000000e-01 : f32
    %61 = vector.broadcast %cst_17 : f32 to vector<1x128xf32>
    %62 = arith.addf %60, %61 : vector<1x128xf32>
    %63 = math.tanh %55 : vector<1x128xf32>
    %64 = vector.extract_strided_slice %62 {offsets = [0, 0], sizes = [1, 32], strides = [1, 1]} : vector<1x128xf32> to vector<1x32xf32>
    %65 = vector.extract_strided_slice %62 {offsets = [0, 32], sizes = [1, 32], strides = [1, 1]} : vector<1x128xf32> to vector<1x32xf32>
    %66 = vector.extract_strided_slice %63 {offsets = [0, 64], sizes = [1, 32], strides = [1, 1]} : vector<1x128xf32> to vector<1x32xf32>
    %67 = vector.extract_strided_slice %62 {offsets = [0, 96], sizes = [1, 32], strides = [1, 1]} : vector<1x128xf32> to vector<1x32xf32>
    %68 = arith.mulf %65, %51 : vector<1x32xf32>
    %69 = arith.mulf %64, %66 : vector<1x32xf32>
    %70 = arith.addf %68, %69 : vector<1x32xf32>
    %71 = math.tanh %70 : vector<1x32xf32>
    %72 = arith.mulf %67, %71 : vector<1x32xf32>
    %cst_18 = arith.constant dense<0.000000e+00> : vector<1x128xf32>
    %73 = tpu.matmul %72, %32, %cst_18 {dimension_numbers = #tpu.dot_dimension_numbers<[1], [0], [0], [1], [0, 0, 1, 1], [], []>} : vector<1x32xf32>, vector<32x128xf32>, vector<1x128xf32> -> vector<1x128xf32>
    %74 = arith.addf %16, %73 : vector<1x128xf32>
    %cst_19 = arith.constant 5.000000e-01 : f32
    %75 = vector.broadcast %cst_19 : f32 to vector<1x128xf32>
    %76 = arith.mulf %75, %74 : vector<1x128xf32>
    %77 = math.tanh %76 : vector<1x128xf32>
    %cst_20 = arith.constant 5.000000e-01 : f32
    %78 = vector.broadcast %cst_20 : f32 to vector<1x128xf32>
    %79 = arith.mulf %78, %77 : vector<1x128xf32>
    %cst_21 = arith.constant 5.000000e-01 : f32
    %80 = vector.broadcast %cst_21 : f32 to vector<1x128xf32>
    %81 = arith.addf %79, %80 : vector<1x128xf32>
    %82 = math.tanh %74 : vector<1x128xf32>
    %83 = vector.extract_strided_slice %81 {offsets = [0, 0], sizes = [1, 32], strides = [1, 1]} : vector<1x128xf32> to vector<1x32xf32>
    %84 = vector.extract_strided_slice %81 {offsets = [0, 32], sizes = [1, 32], strides = [1, 1]} : vector<1x128xf32> to vector<1x32xf32>
    %85 = vector.extract_strided_slice %82 {offsets = [0, 64], sizes = [1, 32], strides = [1, 1]} : vector<1x128xf32> to vector<1x32xf32>
    %86 = vector.extract_strided_slice %81 {offsets = [0, 96], sizes = [1, 32], strides = [1, 1]} : vector<1x128xf32> to vector<1x32xf32>
    %87 = arith.mulf %84, %70 : vector<1x32xf32>
    %88 = arith.mulf %83, %85 : vector<1x32xf32>
    %89 = arith.addf %87, %88 : vector<1x32xf32>
    %90 = math.tanh %89 : vector<1x32xf32>
    %91 = arith.mulf %86, %90 : vector<1x32xf32>
    %cst_22 = arith.constant dense<0.000000e+00> : vector<1x128xf32>
    %92 = tpu.matmul %91, %32, %cst_22 {dimension_numbers = #tpu.dot_dimension_numbers<[1], [0], [0], [1], [0, 0, 1, 1], [], []>} : vector<1x32xf32>, vector<32x128xf32>, vector<1x128xf32> -> vector<1x128xf32>
    %93 = arith.addf %19, %92 : vector<1x128xf32>
    %cst_23 = arith.constant 5.000000e-01 : f32
    %94 = vector.broadcast %cst_23 : f32 to vector<1x128xf32>
    %95 = arith.mulf %94, %93 : vector<1x128xf32>
    %96 = math.tanh %95 : vector<1x128xf32>
    %cst_24 = arith.constant 5.000000e-01 : f32
    %97 = vector.broadcast %cst_24 : f32 to vector<1x128xf32>
    %98 = arith.mulf %97, %96 : vector<1x128xf32>
    %cst_25 = arith.constant 5.000000e-01 : f32
    %99 = vector.broadcast %cst_25 : f32 to vector<1x128xf32>
    %100 = arith.addf %98, %99 : vector<1x128xf32>
    %101 = math.tanh %93 : vector<1x128xf32>
    %102 = vector.extract_strided_slice %100 {offsets = [0, 0], sizes = [1, 32], strides = [1, 1]} : vector<1x128xf32> to vector<1x32xf32>
    %103 = vector.extract_strided_slice %100 {offsets = [0, 32], sizes = [1, 32], strides = [1, 1]} : vector<1x128xf32> to vector<1x32xf32>
    %104 = vector.extract_strided_slice %101 {offsets = [0, 64], sizes = [1, 32], strides = [1, 1]} : vector<1x128xf32> to vector<1x32xf32>
    %105 = vector.extract_strided_slice %100 {offsets = [0, 96], sizes = [1, 32], strides = [1, 1]} : vector<1x128xf32> to vector<1x32xf32>
    %106 = arith.mulf %103, %89 : vector<1x32xf32>
    %107 = arith.mulf %102, %104 : vector<1x32xf32>
    %108 = arith.addf %106, %107 : vector<1x32xf32>
    %109 = math.tanh %108 : vector<1x32xf32>
    %110 = arith.mulf %105, %109 : vector<1x32xf32>
    %cst_26 = arith.constant dense<0.000000e+00> : vector<1x128xf32>
    %111 = tpu.matmul %110, %32, %cst_26 {dimension_numbers = #tpu.dot_dimension_numbers<[1], [0], [0], [1], [0, 0, 1, 1], [], []>} : vector<1x32xf32>, vector<32x128xf32>, vector<1x128xf32> -> vector<1x128xf32>
    %112 = arith.addf %22, %111 : vector<1x128xf32>
    %cst_27 = arith.constant 5.000000e-01 : f32
    %113 = vector.broadcast %cst_27 : f32 to vector<1x128xf32>
    %114 = arith.mulf %113, %112 : vector<1x128xf32>
    %115 = math.tanh %114 : vector<1x128xf32>
    %cst_28 = arith.constant 5.000000e-01 : f32
    %116 = vector.broadcast %cst_28 : f32 to vector<1x128xf32>
    %117 = arith.mulf %116, %115 : vector<1x128xf32>
    %cst_29 = arith.constant 5.000000e-01 : f32
    %118 = vector.broadcast %cst_29 : f32 to vector<1x128xf32>
    %119 = arith.addf %117, %118 : vector<1x128xf32>
    %120 = math.tanh %112 : vector<1x128xf32>
    %121 = vector.extract_strided_slice %119 {offsets = [0, 0], sizes = [1, 32], strides = [1, 1]} : vector<1x128xf32> to vector<1x32xf32>
    %122 = vector.extract_strided_slice %119 {offsets = [0, 32], sizes = [1, 32], strides = [1, 1]} : vector<1x128xf32> to vector<1x32xf32>
    %123 = vector.extract_strided_slice %120 {offsets = [0, 64], sizes = [1, 32], strides = [1, 1]} : vector<1x128xf32> to vector<1x32xf32>
    %124 = vector.extract_strided_slice %119 {offsets = [0, 96], sizes = [1, 32], strides = [1, 1]} : vector<1x128xf32> to vector<1x32xf32>
    %125 = arith.mulf %122, %108 : vector<1x32xf32>
    %126 = arith.mulf %121, %123 : vector<1x32xf32>
    %127 = arith.addf %125, %126 : vector<1x32xf32>
    %128 = math.tanh %127 : vector<1x32xf32>
    %129 = arith.mulf %124, %128 : vector<1x32xf32>
    %cst_30 = arith.constant dense<0.000000e+00> : vector<1x128xf32>
    %130 = tpu.matmul %129, %32, %cst_30 {dimension_numbers = #tpu.dot_dimension_numbers<[1], [0], [0], [1], [0, 0, 1, 1], [], []>} : vector<1x32xf32>, vector<32x128xf32>, vector<1x128xf32> -> vector<1x128xf32>
    %131 = arith.addf %25, %130 : vector<1x128xf32>
    %cst_31 = arith.constant 5.000000e-01 : f32
    %132 = vector.broadcast %cst_31 : f32 to vector<1x128xf32>
    %133 = arith.mulf %132, %131 : vector<1x128xf32>
    %134 = math.tanh %133 : vector<1x128xf32>
    %cst_32 = arith.constant 5.000000e-01 : f32
    %135 = vector.broadcast %cst_32 : f32 to vector<1x128xf32>
    %136 = arith.mulf %135, %134 : vector<1x128xf32>
    %cst_33 = arith.constant 5.000000e-01 : f32
    %137 = vector.broadcast %cst_33 : f32 to vector<1x128xf32>
    %138 = arith.addf %136, %137 : vector<1x128xf32>
    %139 = math.tanh %131 : vector<1x128xf32>
    %140 = vector.extract_strided_slice %138 {offsets = [0, 0], sizes = [1, 32], strides = [1, 1]} : vector<1x128xf32> to vector<1x32xf32>
    %141 = vector.extract_strided_slice %138 {offsets = [0, 32], sizes = [1, 32], strides = [1, 1]} : vector<1x128xf32> to vector<1x32xf32>
    %142 = vector.extract_strided_slice %139 {offsets = [0, 64], sizes = [1, 32], strides = [1, 1]} : vector<1x128xf32> to vector<1x32xf32>
    %143 = vector.extract_strided_slice %138 {offsets = [0, 96], sizes = [1, 32], strides = [1, 1]} : vector<1x128xf32> to vector<1x32xf32>
    %144 = arith.mulf %141, %127 : vector<1x32xf32>
    %145 = arith.mulf %140, %142 : vector<1x32xf32>
    %146 = arith.addf %144, %145 : vector<1x32xf32>
    %147 = math.tanh %146 : vector<1x32xf32>
    %148 = arith.mulf %143, %147 : vector<1x32xf32>
    %cst_34 = arith.constant dense<0.000000e+00> : vector<1x128xf32>
    %149 = tpu.matmul %148, %32, %cst_34 {dimension_numbers = #tpu.dot_dimension_numbers<[1], [0], [0], [1], [0, 0, 1, 1], [], []>} : vector<1x32xf32>, vector<32x128xf32>, vector<1x128xf32> -> vector<1x128xf32>
    %150 = arith.addf %28, %149 : vector<1x128xf32>
    %cst_35 = arith.constant 5.000000e-01 : f32
    %151 = vector.broadcast %cst_35 : f32 to vector<1x128xf32>
    %152 = arith.mulf %151, %150 : vector<1x128xf32>
    %153 = math.tanh %152 : vector<1x128xf32>
    %cst_36 = arith.constant 5.000000e-01 : f32
    %154 = vector.broadcast %cst_36 : f32 to vector<1x128xf32>
    %155 = arith.mulf %154, %153 : vector<1x128xf32>
    %cst_37 = arith.constant 5.000000e-01 : f32
    %156 = vector.broadcast %cst_37 : f32 to vector<1x128xf32>
    %157 = arith.addf %155, %156 : vector<1x128xf32>
    %158 = math.tanh %150 : vector<1x128xf32>
    %159 = vector.extract_strided_slice %157 {offsets = [0, 0], sizes = [1, 32], strides = [1, 1]} : vector<1x128xf32> to vector<1x32xf32>
    %160 = vector.extract_strided_slice %157 {offsets = [0, 32], sizes = [1, 32], strides = [1, 1]} : vector<1x128xf32> to vector<1x32xf32>
    %161 = vector.extract_strided_slice %158 {offsets = [0, 64], sizes = [1, 32], strides = [1, 1]} : vector<1x128xf32> to vector<1x32xf32>
    %162 = vector.extract_strided_slice %157 {offsets = [0, 96], sizes = [1, 32], strides = [1, 1]} : vector<1x128xf32> to vector<1x32xf32>
    %163 = arith.mulf %160, %146 : vector<1x32xf32>
    %164 = arith.mulf %159, %161 : vector<1x32xf32>
    %165 = arith.addf %163, %164 : vector<1x32xf32>
    %166 = math.tanh %165 : vector<1x32xf32>
    %167 = arith.mulf %162, %166 : vector<1x32xf32>
    %cst_38 = arith.constant dense<0.000000e+00> : vector<1x128xf32>
    %168 = tpu.matmul %167, %32, %cst_38 {dimension_numbers = #tpu.dot_dimension_numbers<[1], [0], [0], [1], [0, 0, 1, 1], [], []>} : vector<1x32xf32>, vector<32x128xf32>, vector<1x128xf32> -> vector<1x128xf32>
    %169 = arith.addf %31, %168 : vector<1x128xf32>
    %cst_39 = arith.constant 5.000000e-01 : f32
    %170 = vector.broadcast %cst_39 : f32 to vector<1x128xf32>
    %171 = arith.mulf %170, %169 : vector<1x128xf32>
    %172 = math.tanh %171 : vector<1x128xf32>
    %cst_40 = arith.constant 5.000000e-01 : f32
    %173 = vector.broadcast %cst_40 : f32 to vector<1x128xf32>
    %174 = arith.mulf %173, %172 : vector<1x128xf32>
    %cst_41 = arith.constant 5.000000e-01 : f32
    %175 = vector.broadcast %cst_41 : f32 to vector<1x128xf32>
    %176 = arith.addf %174, %175 : vector<1x128xf32>
    %177 = math.tanh %169 : vector<1x128xf32>
    %178 = vector.extract_strided_slice %176 {offsets = [0, 0], sizes = [1, 32], strides = [1, 1]} : vector<1x128xf32> to vector<1x32xf32>
    %179 = vector.extract_strided_slice %176 {offsets = [0, 32], sizes = [1, 32], strides = [1, 1]} : vector<1x128xf32> to vector<1x32xf32>
    %180 = vector.extract_strided_slice %177 {offsets = [0, 64], sizes = [1, 32], strides = [1, 1]} : vector<1x128xf32> to vector<1x32xf32>
    %181 = vector.extract_strided_slice %176 {offsets = [0, 96], sizes = [1, 32], strides = [1, 1]} : vector<1x128xf32> to vector<1x32xf32>
    %182 = arith.mulf %179, %165 : vector<1x32xf32>
    %183 = arith.mulf %178, %180 : vector<1x32xf32>
    %184 = arith.addf %182, %183 : vector<1x32xf32>
    %185 = math.tanh %184 : vector<1x32xf32>
    %186 = arith.mulf %181, %185 : vector<1x32xf32>
    %187 = tpu.concatenate %53, %72, %91, %110, %129, %148, %167, %186 in 0 : vector<1x32xf32>, vector<1x32xf32>, vector<1x32xf32>, vector<1x32xf32>, vector<1x32xf32>, vector<1x32xf32>, vector<1x32xf32>, vector<1x32xf32> -> vector<8x32xf32>
    %188 = vector.extract_strided_slice %187 {offsets = [0, 0], sizes = [8, 16], strides = [1, 1]} : vector<8x32xf32> to vector<8x16xf32>
    %189 = tpu.concatenate %186, %167, %148, %129, %110, %91, %72, %53 in 0 : vector<1x32xf32>, vector<1x32xf32>, vector<1x32xf32>, vector<1x32xf32>, vector<1x32xf32>, vector<1x32xf32>, vector<1x32xf32>, vector<1x32xf32> -> vector<8x32xf32>
    %190 = vector.extract_strided_slice %189 {offsets = [0, 16], sizes = [8, 16], strides = [1, 1]} : vector<8x32xf32> to vector<8x16xf32>
    %c0_42 = arith.constant 0 : index
    %c0_43 = arith.constant 0 : index
    %191 = vector.load %arg3[%c0_42, %c0_43] : memref<48x7xf32, #tpu.memory_space<vmem>>, vector<16x7xf32>
    %c16_44 = arith.constant 16 : index
    %c0_45 = arith.constant 0 : index
    %192 = vector.load %arg3[%c16_44, %c0_45] : memref<48x7xf32, #tpu.memory_space<vmem>>, vector<16x7xf32>
    %c32 = arith.constant 32 : index
    %c0_46 = arith.constant 0 : index
    %193 = vector.load %arg3[%c32, %c0_46] : memref<48x7xf32, #tpu.memory_space<vmem>>, vector<1x7xf32>
    %cst_47 = arith.constant dense<0.000000e+00> : vector<8x7xf32>
    %194 = tpu.matmul %188, %191, %cst_47 {dimension_numbers = #tpu.dot_dimension_numbers<[1], [0], [0], [1], [0, 0, 1, 1], [], []>} : vector<8x16xf32>, vector<16x7xf32>, vector<8x7xf32> -> vector<8x7xf32>
    %cst_48 = arith.constant dense<0.000000e+00> : vector<8x7xf32>
    %195 = tpu.matmul %190, %192, %cst_48 {dimension_numbers = #tpu.dot_dimension_numbers<[1], [0], [0], [1], [0, 0, 1, 1], [], []>} : vector<8x16xf32>, vector<16x7xf32>, vector<8x7xf32> -> vector<8x7xf32>
    %196 = arith.addf %194, %195 : vector<8x7xf32>
    %197 = vector.broadcast %193 : vector<1x7xf32> to vector<8x7xf32>
    %198 = arith.addf %196, %197 : vector<8x7xf32>
    %c0_49 = arith.constant 0 : index
    %c0_50 = arith.constant 0 : index
    %199 = vector.load %arg4[%c0_49, %c0_50] : memref<8x7xf32, #tpu.memory_space<vmem>>, vector<8x7xf32>
    tpu.vector_store %arg4[%c0_49, %c0_50], %198 {strides = array<i32>} : memref<8x7xf32, #tpu.memory_space<vmem>>, vector<8x7xf32>,
    %c33 = arith.constant 33 : index
    %c0_51 = arith.constant 0 : index
    %200 = vector.load %arg3[%c33, %c0_51] : memref<48x7xf32, #tpu.memory_space<vmem>>, vector<7x7xf32>
    %c40 = arith.constant 40 : index
    %c0_52 = arith.constant 0 : index
    %201 = vector.load %arg3[%c40, %c0_52] : memref<48x7xf32, #tpu.memory_space<vmem>>, vector<7x7xf32>
    %c47 = arith.constant 47 : index
    %c0_53 = arith.constant 0 : index
    %202 = vector.load %arg3[%c47, %c0_53] : memref<48x7xf32, #tpu.memory_space<vmem>>, vector<1x7xf32>
    %203 = tpu.iota {dimensions = array<i32: 0>} : vector<7x7xi32>
    %204 = tpu.iota {dimensions = array<i32: 1>} : vector<7x7xi32>
    %205 = arith.cmpi eq, %203, %204 : vector<7x7xi32>
    %206 = tpu.iota {dimensions = array<i32: 1>} : vector<1x7xi32>
    %207 = tpu.iota {dimensions = array<i32: 0>} : vector<7x1xi32>
    %208 = vector.extract_strided_slice %198 {offsets = [0, 0], sizes = [1, 7], strides = [1, 1]} : vector<8x7xf32> to vector<1x7xf32>
    %209 = vector.broadcast %208 : vector<1x7xf32> to vector<7x7xf32>
    %210 = arith.addf %200, %209 : vector<7x7xf32>
    %211 = vector.extract_strided_slice %198 {offsets = [1, 0], sizes = [1, 7], strides = [1, 1]} : vector<8x7xf32> to vector<1x7xf32>
    %cst_54 = arith.constant 0.000000e+00 : f32
    %212 = vector.shape_cast %211 : vector<1x7xf32> to vector<1x7xf32>
    %213 = vector.broadcast %212 : vector<1x7xf32> to vector<7x7xf32>
    %214 = vector.broadcast %cst_54 : f32 to vector<7x7xf32>
    %215 = arith.select %205, %213, %214 : vector<7x7xi1>, vector<7x7xf32>
    %cst_55 = arith.constant dense<0.000000e+00> : vector<7xf32>
    %216 = vector.multi_reduction <add>, %215, %cst_55 [1] : vector<7x7xf32> to vector<7xf32>
    %217 = vector.shape_cast %216 : vector<7xf32> to vector<7x1xf32>
    %218 = vector.broadcast %217 : vector<7x1xf32> to vector<7x7xf32>
    %219 = arith.addf %201, %218 : vector<7x7xf32>
    %220 = vector.extract_strided_slice %198 {offsets = [2, 0], sizes = [1, 7], strides = [1, 1]} : vector<8x7xf32> to vector<1x7xf32>
    %221 = vector.broadcast %220 : vector<1x7xf32> to vector<7x7xf32>
    %222 = arith.addf %200, %221 : vector<7x7xf32>
    %223 = vector.extract_strided_slice %198 {offsets = [3, 0], sizes = [1, 7], strides = [1, 1]} : vector<8x7xf32> to vector<1x7xf32>
    %cst_56 = arith.constant 0.000000e+00 : f32
    %224 = vector.shape_cast %223 : vector<1x7xf32> to vector<1x7xf32>
    %225 = vector.broadcast %224 : vector<1x7xf32> to vector<7x7xf32>
    %226 = vector.broadcast %cst_56 : f32 to vector<7x7xf32>
    %227 = arith.select %205, %225, %226 : vector<7x7xi1>, vector<7x7xf32>
    %cst_57 = arith.constant dense<0.000000e+00> : vector<7xf32>
    %228 = vector.multi_reduction <add>, %227, %cst_57 [1] : vector<7x7xf32> to vector<7xf32>
    %229 = vector.shape_cast %228 : vector<7xf32> to vector<7x1xf32>
    %230 = vector.broadcast %229 : vector<7x1xf32> to vector<7x7xf32>
    %231 = arith.addf %201, %230 : vector<7x7xf32>
    %232 = vector.extract_strided_slice %198 {offsets = [4, 0], sizes = [1, 7], strides = [1, 1]} : vector<8x7xf32> to vector<1x7xf32>
    %233 = vector.broadcast %232 : vector<1x7xf32> to vector<7x7xf32>
    %234 = arith.addf %200, %233 : vector<7x7xf32>
    %235 = vector.extract_strided_slice %198 {offsets = [5, 0], sizes = [1, 7], strides = [1, 1]} : vector<8x7xf32> to vector<1x7xf32>
    %cst_58 = arith.constant 0.000000e+00 : f32
    %236 = vector.shape_cast %235 : vector<1x7xf32> to vector<1x7xf32>
    %237 = vector.broadcast %236 : vector<1x7xf32> to vector<7x7xf32>
    %238 = vector.broadcast %cst_58 : f32 to vector<7x7xf32>
    %239 = arith.select %205, %237, %238 : vector<7x7xi1>, vector<7x7xf32>
    %cst_59 = arith.constant dense<0.000000e+00> : vector<7xf32>
    %240 = vector.multi_reduction <add>, %239, %cst_59 [1] : vector<7x7xf32> to vector<7xf32>
    %241 = vector.shape_cast %240 : vector<7xf32> to vector<7x1xf32>
    %242 = vector.broadcast %241 : vector<7x1xf32> to vector<7x7xf32>
    %243 = arith.addf %201, %242 : vector<7x7xf32>
    %244 = vector.extract_strided_slice %198 {offsets = [6, 0], sizes = [1, 7], strides = [1, 1]} : vector<8x7xf32> to vector<1x7xf32>
    %245 = vector.broadcast %244 : vector<1x7xf32> to vector<7x7xf32>
    %246 = arith.addf %200, %245 : vector<7x7xf32>
    %247 = vector.extract_strided_slice %198 {offsets = [7, 0], sizes = [1, 7], strides = [1, 1]} : vector<8x7xf32> to vector<1x7xf32>
    %cst_60 = arith.constant 0.000000e+00 : f32
    %248 = vector.shape_cast %247 : vector<1x7xf32> to vector<1x7xf32>
    %249 = vector.broadcast %248 : vector<1x7xf32> to vector<7x7xf32>
    %250 = vector.broadcast %cst_60 : f32 to vector<7x7xf32>
    %251 = arith.select %205, %249, %250 : vector<7x7xi1>, vector<7x7xf32>
    %cst_61 = arith.constant dense<0.000000e+00> : vector<7xf32>
    %252 = vector.multi_reduction <add>, %251, %cst_61 [1] : vector<7x7xf32> to vector<7xf32>
    %253 = vector.shape_cast %252 : vector<7xf32> to vector<7x1xf32>
    %254 = vector.broadcast %253 : vector<7x1xf32> to vector<7x7xf32>
    %255 = arith.addf %201, %254 : vector<7x7xf32>
    %c5_i32 = arith.constant 5 : i32
    %256 = vector.broadcast %c5_i32 : i32 to vector<7x1xi32>
    %257 = arith.cmpi eq, %207, %256 : vector<7x1xi32>
    %cst_62 = arith.constant 0.000000e+00 : f32
    %cst_63 = arith.constant -1.000000e+04 : f32
    %258 = vector.broadcast %cst_62 : f32 to vector<7x1xf32>
    %259 = vector.broadcast %cst_63 : f32 to vector<7x1xf32>
    %260 = arith.select %257, %258, %259 : vector<7x1xi1>, vector<7x1xf32>
    %261 = vector.broadcast %260 : vector<7x1xf32> to vector<7x7xf32>
    %262 = arith.addf %261, %210 : vector<7x7xf32>
    %cst_64 = arith.constant dense<0xFF800000> : vector<7xf32>
    %263 = vector.multi_reduction <maximumf>, %262, %cst_64 [0] : vector<7x7xf32> to vector<7xf32>
    %264 = vector.shape_cast %263 : vector<7xf32> to vector<1x7xf32>
    %265 = vector.broadcast %264 : vector<1x7xf32> to vector<7x7xf32>
    %266 = arith.cmpf oeq, %262, %265 : vector<7x7xf32>
    %c7_i32 = arith.constant 7 : i32
    %267 = vector.broadcast %c7_i32 : i32 to vector<7x7xi32>
    %268 = arith.select %266, %203, %267 : vector<7x7xi1>, vector<7x7xi32>
    %cst_65 = arith.constant dense<2147483647> : vector<7xi32>
    %269 = vector.multi_reduction <minsi>, %268, %cst_65 [0] : vector<7x7xi32> to vector<7xi32>
    %270 = vector.shape_cast %269 : vector<7xi32> to vector<1x7xi32>
    %271 = vector.broadcast %264 : vector<1x7xf32> to vector<7x7xf32>
    %272 = arith.addf %271, %219 : vector<7x7xf32>
    %cst_66 = arith.constant dense<0xFF800000> : vector<7xf32>
    %273 = vector.multi_reduction <maximumf>, %272, %cst_66 [1] : vector<7x7xf32> to vector<7xf32>
    %274 = vector.shape_cast %273 : vector<7xf32> to vector<7x1xf32>
    %275 = vector.broadcast %274 : vector<7x1xf32> to vector<7x7xf32>
    %276 = arith.cmpf oeq, %272, %275 : vector<7x7xf32>
    %c7_i32_67 = arith.constant 7 : i32
    %277 = vector.broadcast %c7_i32_67 : i32 to vector<7x7xi32>
    %278 = arith.select %276, %204, %277 : vector<7x7xi1>, vector<7x7xi32>
    %cst_68 = arith.constant dense<2147483647> : vector<7xi32>
    %279 = vector.multi_reduction <minsi>, %278, %cst_68 [1] : vector<7x7xi32> to vector<7xi32>
    %280 = vector.shape_cast %279 : vector<7xi32> to vector<7x1xi32>
    %281 = vector.broadcast %274 : vector<7x1xf32> to vector<7x7xf32>
    %282 = arith.addf %281, %222 : vector<7x7xf32>
    %cst_69 = arith.constant dense<0xFF800000> : vector<7xf32>
    %283 = vector.multi_reduction <maximumf>, %282, %cst_69 [0] : vector<7x7xf32> to vector<7xf32>
    %284 = vector.shape_cast %283 : vector<7xf32> to vector<1x7xf32>
    %285 = vector.broadcast %284 : vector<1x7xf32> to vector<7x7xf32>
    %286 = arith.cmpf oeq, %282, %285 : vector<7x7xf32>
    %c7_i32_70 = arith.constant 7 : i32
    %287 = vector.broadcast %c7_i32_70 : i32 to vector<7x7xi32>
    %288 = arith.select %286, %203, %287 : vector<7x7xi1>, vector<7x7xi32>
    %cst_71 = arith.constant dense<2147483647> : vector<7xi32>
    %289 = vector.multi_reduction <minsi>, %288, %cst_71 [0] : vector<7x7xi32> to vector<7xi32>
    %290 = vector.shape_cast %289 : vector<7xi32> to vector<1x7xi32>
    %291 = vector.broadcast %284 : vector<1x7xf32> to vector<7x7xf32>
    %292 = arith.addf %291, %231 : vector<7x7xf32>
    %cst_72 = arith.constant dense<0xFF800000> : vector<7xf32>
    %293 = vector.multi_reduction <maximumf>, %292, %cst_72 [1] : vector<7x7xf32> to vector<7xf32>
    %294 = vector.shape_cast %293 : vector<7xf32> to vector<7x1xf32>
    %295 = vector.broadcast %294 : vector<7x1xf32> to vector<7x7xf32>
    %296 = arith.cmpf oeq, %292, %295 : vector<7x7xf32>
    %c7_i32_73 = arith.constant 7 : i32
    %297 = vector.broadcast %c7_i32_73 : i32 to vector<7x7xi32>
    %298 = arith.select %296, %204, %297 : vector<7x7xi1>, vector<7x7xi32>
    %cst_74 = arith.constant dense<2147483647> : vector<7xi32>
    %299 = vector.multi_reduction <minsi>, %298, %cst_74 [1] : vector<7x7xi32> to vector<7xi32>
    %300 = vector.shape_cast %299 : vector<7xi32> to vector<7x1xi32>
    %301 = vector.broadcast %294 : vector<7x1xf32> to vector<7x7xf32>
    %302 = arith.addf %301, %234 : vector<7x7xf32>
    %cst_75 = arith.constant dense<0xFF800000> : vector<7xf32>
    %303 = vector.multi_reduction <maximumf>, %302, %cst_75 [0] : vector<7x7xf32> to vector<7xf32>
    %304 = vector.shape_cast %303 : vector<7xf32> to vector<1x7xf32>
    %305 = vector.broadcast %304 : vector<1x7xf32> to vector<7x7xf32>
    %306 = arith.cmpf oeq, %302, %305 : vector<7x7xf32>
    %c7_i32_76 = arith.constant 7 : i32
    %307 = vector.broadcast %c7_i32_76 : i32 to vector<7x7xi32>
    %308 = arith.select %306, %203, %307 : vector<7x7xi1>, vector<7x7xi32>
    %cst_77 = arith.constant dense<2147483647> : vector<7xi32>
    %309 = vector.multi_reduction <minsi>, %308, %cst_77 [0] : vector<7x7xi32> to vector<7xi32>
    %310 = vector.shape_cast %309 : vector<7xi32> to vector<1x7xi32>
    %311 = vector.broadcast %304 : vector<1x7xf32> to vector<7x7xf32>
    %312 = arith.addf %311, %243 : vector<7x7xf32>
    %cst_78 = arith.constant dense<0xFF800000> : vector<7xf32>
    %313 = vector.multi_reduction <maximumf>, %312, %cst_78 [1] : vector<7x7xf32> to vector<7xf32>
    %314 = vector.shape_cast %313 : vector<7xf32> to vector<7x1xf32>
    %315 = vector.broadcast %314 : vector<7x1xf32> to vector<7x7xf32>
    %316 = arith.cmpf oeq, %312, %315 : vector<7x7xf32>
    %c7_i32_79 = arith.constant 7 : i32
    %317 = vector.broadcast %c7_i32_79 : i32 to vector<7x7xi32>
    %318 = arith.select %316, %204, %317 : vector<7x7xi1>, vector<7x7xi32>
    %cst_80 = arith.constant dense<2147483647> : vector<7xi32>
    %319 = vector.multi_reduction <minsi>, %318, %cst_80 [1] : vector<7x7xi32> to vector<7xi32>
    %320 = vector.shape_cast %319 : vector<7xi32> to vector<7x1xi32>
    %321 = vector.broadcast %314 : vector<7x1xf32> to vector<7x7xf32>
    %322 = arith.addf %321, %246 : vector<7x7xf32>
    %cst_81 = arith.constant dense<0xFF800000> : vector<7xf32>
    %323 = vector.multi_reduction <maximumf>, %322, %cst_81 [0] : vector<7x7xf32> to vector<7xf32>
    %324 = vector.shape_cast %323 : vector<7xf32> to vector<1x7xf32>
    %325 = vector.broadcast %324 : vector<1x7xf32> to vector<7x7xf32>
    %326 = arith.cmpf oeq, %322, %325 : vector<7x7xf32>
    %c7_i32_82 = arith.constant 7 : i32
    %327 = vector.broadcast %c7_i32_82 : i32 to vector<7x7xi32>
    %328 = arith.select %326, %203, %327 : vector<7x7xi1>, vector<7x7xi32>
    %cst_83 = arith.constant dense<2147483647> : vector<7xi32>
    %329 = vector.multi_reduction <minsi>, %328, %cst_83 [0] : vector<7x7xi32> to vector<7xi32>
    %330 = vector.shape_cast %329 : vector<7xi32> to vector<1x7xi32>
    %331 = vector.broadcast %324 : vector<1x7xf32> to vector<7x7xf32>
    %332 = arith.addf %331, %255 : vector<7x7xf32>
    %cst_84 = arith.constant dense<0xFF800000> : vector<7xf32>
    %333 = vector.multi_reduction <maximumf>, %332, %cst_84 [1] : vector<7x7xf32> to vector<7xf32>
    %334 = vector.shape_cast %333 : vector<7xf32> to vector<7x1xf32>
    %335 = vector.broadcast %334 : vector<7x1xf32> to vector<7x7xf32>
    %336 = arith.cmpf oeq, %332, %335 : vector<7x7xf32>
    %c7_i32_85 = arith.constant 7 : i32
    %337 = vector.broadcast %c7_i32_85 : i32 to vector<7x7xi32>
    %338 = arith.select %336, %204, %337 : vector<7x7xi1>, vector<7x7xi32>
    %cst_86 = arith.constant dense<2147483647> : vector<7xi32>
    %339 = vector.multi_reduction <minsi>, %338, %cst_86 [1] : vector<7x7xi32> to vector<7xi32>
    %340 = vector.shape_cast %339 : vector<7xi32> to vector<7x1xi32>
    %cst_87 = arith.constant 0.000000e+00 : f32
    %341 = vector.shape_cast %202 : vector<1x7xf32> to vector<1x7xf32>
    %342 = vector.broadcast %341 : vector<1x7xf32> to vector<7x7xf32>
    %343 = vector.broadcast %cst_87 : f32 to vector<7x7xf32>
    %344 = arith.select %205, %342, %343 : vector<7x7xi1>, vector<7x7xf32>
    %cst_88 = arith.constant dense<0.000000e+00> : vector<7xf32>
    %345 = vector.multi_reduction <add>, %344, %cst_88 [1] : vector<7x7xf32> to vector<7xf32>
    %346 = vector.shape_cast %345 : vector<7xf32> to vector<7x1xf32>
    %347 = arith.addf %334, %346 : vector<7x1xf32>
    %cst_89 = arith.constant dense<0xFF800000> : vector<1xf32>
    %348 = vector.multi_reduction <maximumf>, %347, %cst_89 [0] : vector<7x1xf32> to vector<1xf32>
    %349 = vector.shape_cast %348 : vector<1xf32> to vector<1x1xf32>
    %350 = vector.broadcast %349 : vector<1x1xf32> to vector<7x1xf32>
    %351 = arith.cmpf oeq, %347, %350 : vector<7x1xf32>
    %c7_i32_90 = arith.constant 7 : i32
    %352 = vector.broadcast %c7_i32_90 : i32 to vector<7x1xi32>
    %353 = arith.select %351, %207, %352 : vector<7x1xi1>, vector<7x1xi32>
    %cst_91 = arith.constant dense<2147483647> : vector<1xi32>
    %354 = vector.multi_reduction <minsi>, %353, %cst_91 [0] : vector<7x1xi32> to vector<1xi32>
    %355 = vector.shape_cast %354 : vector<1xi32> to vector<1x1xi32>
    %356 = vector.broadcast %355 : vector<1x1xi32> to vector<7x1xi32>
    %357 = arith.cmpi eq, %207, %356 : vector<7x1xi32>
    %c0_i32 = arith.constant 0 : i32
    %358 = vector.broadcast %c0_i32 : i32 to vector<7x1xi32>
    %359 = arith.select %357, %340, %358 : vector<7x1xi1>, vector<7x1xi32>
    %cst_92 = arith.constant dense<0> : vector<1xi32>
    %360 = vector.multi_reduction <add>, %359, %cst_92 [0] : vector<7x1xi32> to vector<1xi32>
    %361 = vector.shape_cast %360 : vector<1xi32> to vector<1x1xi32>
    %362 = vector.broadcast %361 : vector<1x1xi32> to vector<1x7xi32>
    %363 = arith.cmpi eq, %206, %362 : vector<1x7xi32>
    %c0_i32_93 = arith.constant 0 : i32
    %364 = vector.broadcast %c0_i32_93 : i32 to vector<1x7xi32>
    %365 = arith.select %363, %330, %364 : vector<1x7xi1>, vector<1x7xi32>
    %cst_94 = arith.constant dense<0> : vector<1xi32>
    %366 = vector.multi_reduction <add>, %365, %cst_94 [1] : vector<1x7xi32> to vector<1xi32>
    %367 = vector.shape_cast %366 : vector<1xi32> to vector<1x1xi32>
    %368 = vector.broadcast %367 : vector<1x1xi32> to vector<7x1xi32>
    %369 = arith.cmpi eq, %207, %368 : vector<7x1xi32>
    %c0_i32_95 = arith.constant 0 : i32
    %370 = vector.broadcast %c0_i32_95 : i32 to vector<7x1xi32>
    %371 = arith.select %369, %320, %370 : vector<7x1xi1>, vector<7x1xi32>
    %cst_96 = arith.constant dense<0> : vector<1xi32>
    %372 = vector.multi_reduction <add>, %371, %cst_96 [0] : vector<7x1xi32> to vector<1xi32>
    %373 = vector.shape_cast %372 : vector<1xi32> to vector<1x1xi32>
    %374 = vector.broadcast %373 : vector<1x1xi32> to vector<1x7xi32>
    %375 = arith.cmpi eq, %206, %374 : vector<1x7xi32>
    %c0_i32_97 = arith.constant 0 : i32
    %376 = vector.broadcast %c0_i32_97 : i32 to vector<1x7xi32>
    %377 = arith.select %375, %310, %376 : vector<1x7xi1>, vector<1x7xi32>
    %cst_98 = arith.constant dense<0> : vector<1xi32>
    %378 = vector.multi_reduction <add>, %377, %cst_98 [1] : vector<1x7xi32> to vector<1xi32>
    %379 = vector.shape_cast %378 : vector<1xi32> to vector<1x1xi32>
    %380 = vector.broadcast %379 : vector<1x1xi32> to vector<7x1xi32>
    %381 = arith.cmpi eq, %207, %380 : vector<7x1xi32>
    %c0_i32_99 = arith.constant 0 : i32
    %382 = vector.broadcast %c0_i32_99 : i32 to vector<7x1xi32>
    %383 = arith.select %381, %300, %382 : vector<7x1xi1>, vector<7x1xi32>
    %cst_100 = arith.constant dense<0> : vector<1xi32>
    %384 = vector.multi_reduction <add>, %383, %cst_100 [0] : vector<7x1xi32> to vector<1xi32>
    %385 = vector.shape_cast %384 : vector<1xi32> to vector<1x1xi32>
    %386 = vector.broadcast %385 : vector<1x1xi32> to vector<1x7xi32>
    %387 = arith.cmpi eq, %206, %386 : vector<1x7xi32>
    %c0_i32_101 = arith.constant 0 : i32
    %388 = vector.broadcast %c0_i32_101 : i32 to vector<1x7xi32>
    %389 = arith.select %387, %290, %388 : vector<1x7xi1>, vector<1x7xi32>
    %cst_102 = arith.constant dense<0> : vector<1xi32>
    %390 = vector.multi_reduction <add>, %389, %cst_102 [1] : vector<1x7xi32> to vector<1xi32>
    %391 = vector.shape_cast %390 : vector<1xi32> to vector<1x1xi32>
    %392 = vector.broadcast %391 : vector<1x1xi32> to vector<7x1xi32>
    %393 = arith.cmpi eq, %207, %392 : vector<7x1xi32>
    %c0_i32_103 = arith.constant 0 : i32
    %394 = vector.broadcast %c0_i32_103 : i32 to vector<7x1xi32>
    %395 = arith.select %393, %280, %394 : vector<7x1xi1>, vector<7x1xi32>
    %cst_104 = arith.constant dense<0> : vector<1xi32>
    %396 = vector.multi_reduction <add>, %395, %cst_104 [0] : vector<7x1xi32> to vector<1xi32>
    %397 = vector.shape_cast %396 : vector<1xi32> to vector<1x1xi32>
    %398 = vector.broadcast %397 : vector<1x1xi32> to vector<1x7xi32>
    %399 = arith.cmpi eq, %206, %398 : vector<1x7xi32>
    %c0_i32_105 = arith.constant 0 : i32
    %400 = vector.broadcast %c0_i32_105 : i32 to vector<1x7xi32>
    %401 = arith.select %399, %270, %400 : vector<1x7xi1>, vector<1x7xi32>
    %cst_106 = arith.constant dense<0> : vector<1xi32>
    %402 = vector.multi_reduction <add>, %401, %cst_106 [1] : vector<1x7xi32> to vector<1xi32>
    %403 = vector.shape_cast %402 : vector<1xi32> to vector<1x1xi32>
    %404 = tpu.iota {dimensions = array<i32: 1>} : vector<1x8xi32>
    %c0_i32_107 = arith.constant 0 : i32
    %405 = vector.broadcast %c0_i32_107 : i32 to vector<1x8xi32>
    %c0_i32_108 = arith.constant 0 : i32
    %406 = vector.broadcast %c0_i32_108 : i32 to vector<1x8xi32>
    %407 = arith.cmpi eq, %404, %406 : vector<1x8xi32>
    %c0_i32_109 = arith.constant 0 : i32
    %408 = vector.shape_cast %397 : vector<1x1xi32> to vector<1x1xi32>
    %409 = vector.broadcast %408 : vector<1x1xi32> to vector<1x8xi32>
    %410 = vector.broadcast %c0_i32_109 : i32 to vector<1x8xi32>
    %411 = arith.select %407, %409, %410 : vector<1x8xi1>, vector<1x8xi32>
    %412 = arith.addi %405, %411 : vector<1x8xi32>
    %c1_i32 = arith.constant 1 : i32
    %413 = vector.broadcast %c1_i32 : i32 to vector<1x8xi32>
    %414 = arith.cmpi eq, %404, %413 : vector<1x8xi32>
    %c0_i32_110 = arith.constant 0 : i32
    %415 = vector.shape_cast %391 : vector<1x1xi32> to vector<1x1xi32>
    %416 = vector.broadcast %415 : vector<1x1xi32> to vector<1x8xi32>
    %417 = vector.broadcast %c0_i32_110 : i32 to vector<1x8xi32>
    %418 = arith.select %414, %416, %417 : vector<1x8xi1>, vector<1x8xi32>
    %419 = arith.addi %412, %418 : vector<1x8xi32>
    %c2_i32 = arith.constant 2 : i32
    %420 = vector.broadcast %c2_i32 : i32 to vector<1x8xi32>
    %421 = arith.cmpi eq, %404, %420 : vector<1x8xi32>
    %c0_i32_111 = arith.constant 0 : i32
    %422 = vector.shape_cast %385 : vector<1x1xi32> to vector<1x1xi32>
    %423 = vector.broadcast %422 : vector<1x1xi32> to vector<1x8xi32>
    %424 = vector.broadcast %c0_i32_111 : i32 to vector<1x8xi32>
    %425 = arith.select %421, %423, %424 : vector<1x8xi1>, vector<1x8xi32>
    %426 = arith.addi %419, %425 : vector<1x8xi32>
    %c3_i32 = arith.constant 3 : i32
    %427 = vector.broadcast %c3_i32 : i32 to vector<1x8xi32>
    %428 = arith.cmpi eq, %404, %427 : vector<1x8xi32>
    %c0_i32_112 = arith.constant 0 : i32
    %429 = vector.shape_cast %379 : vector<1x1xi32> to vector<1x1xi32>
    %430 = vector.broadcast %429 : vector<1x1xi32> to vector<1x8xi32>
    %431 = vector.broadcast %c0_i32_112 : i32 to vector<1x8xi32>
    %432 = arith.select %428, %430, %431 : vector<1x8xi1>, vector<1x8xi32>
    %433 = arith.addi %426, %432 : vector<1x8xi32>
    %c4_i32 = arith.constant 4 : i32
    %434 = vector.broadcast %c4_i32 : i32 to vector<1x8xi32>
    %435 = arith.cmpi eq, %404, %434 : vector<1x8xi32>
    %c0_i32_113 = arith.constant 0 : i32
    %436 = vector.shape_cast %373 : vector<1x1xi32> to vector<1x1xi32>
    %437 = vector.broadcast %436 : vector<1x1xi32> to vector<1x8xi32>
    %438 = vector.broadcast %c0_i32_113 : i32 to vector<1x8xi32>
    %439 = arith.select %435, %437, %438 : vector<1x8xi1>, vector<1x8xi32>
    %440 = arith.addi %433, %439 : vector<1x8xi32>
    %c5_i32_114 = arith.constant 5 : i32
    %441 = vector.broadcast %c5_i32_114 : i32 to vector<1x8xi32>
    %442 = arith.cmpi eq, %404, %441 : vector<1x8xi32>
    %c0_i32_115 = arith.constant 0 : i32
    %443 = vector.shape_cast %367 : vector<1x1xi32> to vector<1x1xi32>
    %444 = vector.broadcast %443 : vector<1x1xi32> to vector<1x8xi32>
    %445 = vector.broadcast %c0_i32_115 : i32 to vector<1x8xi32>
    %446 = arith.select %442, %444, %445 : vector<1x8xi1>, vector<1x8xi32>
    %447 = arith.addi %440, %446 : vector<1x8xi32>
    %c6_i32 = arith.constant 6 : i32
    %448 = vector.broadcast %c6_i32 : i32 to vector<1x8xi32>
    %449 = arith.cmpi eq, %404, %448 : vector<1x8xi32>
    %c0_i32_116 = arith.constant 0 : i32
    %450 = vector.shape_cast %361 : vector<1x1xi32> to vector<1x1xi32>
    %451 = vector.broadcast %450 : vector<1x1xi32> to vector<1x8xi32>
    %452 = vector.broadcast %c0_i32_116 : i32 to vector<1x8xi32>
    %453 = arith.select %449, %451, %452 : vector<1x8xi1>, vector<1x8xi32>
    %454 = arith.addi %447, %453 : vector<1x8xi32>
    %c7_i32_117 = arith.constant 7 : i32
    %455 = vector.broadcast %c7_i32_117 : i32 to vector<1x8xi32>
    %456 = arith.cmpi eq, %404, %455 : vector<1x8xi32>
    %c0_i32_118 = arith.constant 0 : i32
    %457 = vector.shape_cast %355 : vector<1x1xi32> to vector<1x1xi32>
    %458 = vector.broadcast %457 : vector<1x1xi32> to vector<1x8xi32>
    %459 = vector.broadcast %c0_i32_118 : i32 to vector<1x8xi32>
    %460 = arith.select %456, %458, %459 : vector<1x8xi1>, vector<1x8xi32>
    %461 = arith.addi %454, %460 : vector<1x8xi32>
    %c0_119 = arith.constant 0 : index
    %c0_120 = arith.constant 0 : index
    %462 = vector.load %arg5[%c0_119, %c0_120] : memref<1x8xi32, #tpu.memory_space<vmem>>, vector<1x8xi32>
    tpu.vector_store %arg5[%c0_119, %c0_120], %461 {strides = array<i32>} : memref<1x8xi32, #tpu.memory_space<vmem>>, vector<1x8xi32>,
    %c0_121 = arith.constant 0 : index
    %c0_122 = arith.constant 0 : index
    %463 = vector.load %arg6[%c0_121, %c0_122] : memref<1x1xf32, #tpu.memory_space<vmem>>, vector<1x1xf32>
    tpu.vector_store %arg6[%c0_121, %c0_122], %349 {strides = array<i32>} : memref<1x1xf32, #tpu.memory_space<vmem>>, vector<1x1xf32>,
    %c0_123 = arith.constant 0 : index
    %c0_124 = arith.constant 0 : index
    %464 = vector.load %arg7[%c0_123, %c0_124] : memref<1x1xi32, #tpu.memory_space<vmem>>, vector<1x1xi32>
    tpu.vector_store %arg7[%c0_123, %c0_124], %403 {strides = array<i32>} : memref<1x1xi32, #tpu.memory_space<vmem>>, vector<1x1xi32>,
    return
  }
}

</mosaic_0001>

<llo_original>
// kernel: tpu_custom_call.1
$region0: #{tpu_custom_call.1}
  #allocation0 [shape = 'u32[]', space=smem, size = 0x4, offset = 0x4, fixed_abs, tag = 'smem constant byte address 0x4 - core index']
  #allocation1 [shape = 'u32[72,128]{1,0:T(1,128)}', space=vmem, size = 0x9000, scoped, tag = 'internal scratch']
  %s0 = inlined_call_operand.hbm [shape: f32[8,8], index: 0, kind: input, shape index: {}]
  %s1 = inlined_call_operand.vmem [shape: f32[17,128], index: 1, kind: input, shape index: {}]
  %s2 = inlined_call_operand.vmem [shape: f32[32,128], index: 2, kind: input, shape index: {}]
  %s3 = inlined_call_operand.vmem [shape: f32[48,7], index: 3, kind: input, shape index: {}]
  %s4 = inlined_call_operand.hbm [shape: f32[8,7], index: 4, kind: output, shape index: {0}]
  %s5 = inlined_call_operand.hbm [shape: s32[1,8], index: 5, kind: output, shape index: {1}]
  %s6 = inlined_call_operand.hbm [shape: f32[1,1], index: 6, kind: output, shape index: {2}]
  %s7 = inlined_call_operand.hbm [shape: s32[1,1], index: 7, kind: output, shape index: {3}]
  %8 = xla_tuple %s4, %s5, %s6, %s7
  %s9 = sld [smem:[#allocation0]]
  $region54: #{tpu_custom_call.1} parent=0
    _
  %s11 = ssub.s32 1, %s9
  %s12 = scalar_select 0, %s11, %s9
  $region1: #{tpu_custom_call.1} parent=0
    #allocation2 [shape = 'u8[4096]{0}', space=vmem, size = 0x1000, scoped, tag = 'input window, operand 0, single buffered']
    #allocation3 [shape = 's32[1]{0}', space=sflag, size = 0x4, scoped, tag = 'scoped memory for tpu_custom_call.1']
    #allocation4 [shape = 's32[1]{0}', space=sflag, size = 0x4, scoped, tag = 'scoped memory for tpu_custom_call.1']
    #allocation5 [shape = 'u8[4096]{0}', space=vmem, size = 0x1000, scoped, tag = 'output window, operand 0, single buffered']
    #allocation6 [shape = 'u8[512]{0}', space=vmem, size = 0x400, scoped, tag = 'output window, operand 1, single buffered']
    #allocation7 [shape = 's32[1]{0}', space=sflag, size = 0x4, scoped, tag = 'scoped memory for tpu_custom_call.1']
    #allocation8 [shape = 'u8[512]{0}', space=vmem, size = 0x400, scoped, tag = 'output window, operand 2, single buffered']
    #allocation9 [shape = 'u8[512]{0}', space=vmem, size = 0x400, scoped, tag = 'output window, operand 3, single buffered']
    #allocation10 [shape = 's32[1]{0}', space=sflag, size = 0x4, scoped, tag = 'scoped memory for tpu_custom_call.1']
    %13 = vsyncpa [#allocation3], 0
    %14 = vsyncpa [#allocation4], 0
    %15 = vsyncpa [#allocation7], 0
    %16 = vsyncpa [#allocation10], 0
    // Predicated region
    $region2: #{tpu_custom_call.1} parent=1 // pred_check
      _
    $region3: #{tpu_custom_call.1} parent=1 // pred_check_branch
      %18 = sbr.rel (0) target = $region5
    $region4: #{tpu_custom_call.1} parent=1 // pred_region
      %20 = vsyncadd [#allocation3], 0
      %s22 = sshll.u32 %s0, 4
      %s23 = int_to_ptr.hbm [resolvable:$true] %s22
      %s24 = sshll.u32 [#allocation2], 4
      %s25 = int_to_ptr.vmem [resolvable:$true] %s24
      %27 = dma.hbm_to_vmem [thread:$0]  %s23, 128, %s25, [#allocation3]
    $region5: #{tpu_custom_call.1} parent=1 // pred_fallthru
      _
    // Predicated region
    $region6: #{tpu_custom_call.1} parent=1 // pred_check
      _
    $region7: #{tpu_custom_call.1} parent=1 // pred_check_branch
      %29 = sbr.rel (0) target = $region9
    $region8: #{tpu_custom_call.1} parent=1 // pred_region
      _
    $region9: #{tpu_custom_call.1} parent=1 // pred_fallthru
      _
    // Predicated region
    $region10: #{tpu_custom_call.1} parent=1 // pred_check
      _
    $region11: #{tpu_custom_call.1} parent=1 // pred_check_branch
      %31 = sbr.rel (0) target = $region13
    $region12: #{tpu_custom_call.1} parent=1 // pred_region
      _
    $region13: #{tpu_custom_call.1} parent=1 // pred_fallthru
      _
    // Predicated region
    $region14: #{tpu_custom_call.1} parent=1 // pred_check
      _
    $region15: #{tpu_custom_call.1} parent=1 // pred_check_branch
      %33 = sbr.rel (0) target = $region17
    $region16: #{tpu_custom_call.1} parent=1 // pred_region
      _
    $region17: #{tpu_custom_call.1} parent=1 // pred_fallthru
      _
    // Predicated region
    $region18: #{tpu_custom_call.1} parent=1 // pred_check
      _
    $region19: #{tpu_custom_call.1} parent=1 // pred_check_branch
      %35 = sbr.rel (0) target = $region21
    $region20: #{tpu_custom_call.1} parent=1 // pred_region
      %37 = dma.done [#allocation3], 128
    $region21: #{tpu_custom_call.1} parent=1 // pred_fallthru
      _
    %v38 = vld [vmem:[#allocation2] sm:$0xff]
    %v39 = vld [vmem:[%s1] sm:$0xff]
    %v40 = vld [vmem:[%s1 + $0x8] sm:$0xff]
    %v41 = vld [vmem:[%s1 + $0x10] sm:$0x1]
    %v42 = vperm.slane %v41, 0
    %vm43 = vcmask 64512
    %v45 = vsel %vm43, %v38, 0
    %47 = vmatpush.msra.mxu0 0.0
    %48 = vmatpush.msra.mxu0 0.0
    %49 = vmatpush.msra.mxu0 0.0
    %50 = vmatpush.msra.mxu0 0.0
    %51 = vmatpush.msra.mxu0 0.0
    %52 = vmatpush.msra.mxu0 0.0
    %53 = vmatpush.msra.mxu0 0.0
    %54 = vmatpush.msra.mxu0 0.0
    %55 = vmatpush.msra.mxu0 0.0
    %56 = vmatpush.msra.mxu0 0.0
    %57 = vmatpush.msra.mxu0 0.0
    %58 = vmatpush.msra.mxu0 0.0
    %59 = vmatpush.msra.mxu0 0.0
    %60 = vmatpush.msra.mxu0 0.0
    %61 = vmatpush.msra.mxu0 0.0
    %62 = vmatpush.msra.mxu0 %v39
    %63 = vmatmul.f32.gmra.mxu0 %v45
    %v64 = vpop.f32.mrf.mxu0
    %v65 = vadd.f32 %v42, %v64
    %66 = vdwg.mxu0
    %67 = vmatpush.msra.mxu0 0.0
    %68 = vmatpush.msra.mxu0 0.0
    %69 = vmatpush.msra.mxu0 0.0
    %70 = vmatpush.msra.mxu0 0.0
    %71 = vmatpush.msra.mxu0 0.0
    %72 = vmatpush.msra.mxu0 0.0
    %73 = vmatpush.msra.mxu0 0.0
    %74 = vmatpush.msra.mxu0 0.0
    %75 = vmatpush.msra.mxu0 0.0
    %76 = vmatpush.msra.mxu0 0.0
    %77 = vmatpush.msra.mxu0 0.0
    %78 = vmatpush.msra.mxu0 0.0
    %79 = vmatpush.msra.mxu0 0.0
    %80 = vmatpush.msra.mxu0 0.0
    %81 = vmatpush.msra.mxu0 0.0
    %82 = vmatpush.msra.mxu0 %v40
    %83 = vmatmul.f32.gmra.mxu0 %v45
    %v84 = vpop.f32.mrf.mxu0
    %v85 = vadd.f32 0.0, %v84
    %86 = vdwg.mxu0
    %v88 = vrot.slane %v85, 7
    %v90 = vadd.f32 %v65, %v88
    %v91 = vrot.slane %v85, 5
    %v93 = vadd.f32 %v65, %v91
    %v94 = vrot.slane %v85, 3
    %v96 = vadd.f32 %v65, %v94
    %v97 = vrot.slane %v85, 1
    %v99 = vadd.f32 %v65, %v97
    %v100 = vld [vmem:[%s2] sm:$0xff]
    %v101 = vld [vmem:[%s2 + $0x8] sm:$0xff]
    %v102 = vld [vmem:[%s2 + $0x10] sm:$0xff]
    %v103 = vld [vmem:[%s2 + $0x18] sm:$0xff]
    %vm104 = vcmask 261120
    %v106 = vsel %vm104, 0.0, 0
    %108 = vmatpush.msra.mxu0 0.0
    %109 = vmatpush.msra.mxu0 0.0
    %110 = vmatpush.msra.mxu0 0.0
    %111 = vmatpush.msra.mxu0 0.0
    %112 = vmatpush.msra.mxu0 0.0
    %113 = vmatpush.msra.mxu0 0.0
    %114 = vmatpush.msra.mxu0 0.0
    %115 = vmatpush.msra.mxu0 0.0
    %116 = vmatpush.msra.mxu0 0.0
    %117 = vmatpush.msra.mxu0 0.0
    %118 = vmatpush.msra.mxu0 0.0
    %119 = vmatpush.msra.mxu0 0.0
    %120 = vmatpush.msra.mxu0 %v103
    %121 = vmatpush.msra.mxu0 %v102
    %122 = vmatpush.msra.mxu0 %v101
    %123 = vmatpush.msra.mxu0 %v100
    %124 = vmatmul.f32.gmra.mxu0 %v106
    %v125 = vpop.f32.mrf.mxu0
    %v126 = vadd.f32 0.0, %v125
    %127 = vdwg.mxu0
    %v128 = vadd.f32 %v90, %v126
    %v129 = vmul.f32 %v128, 0.5
    %v130 = vtanh.pop %v129
    %v131 = vmul.f32 %v130, 0.5
    %v132 = vadd.f32 %v131, 0.5
    %v133 = vtanh.pop %v128
    %v134 = vmul.f32 %v132, 0.0
    %136 = vrot.lane.b32.xlu0 %v133, 64
    %v137 = vpop.permute.xlu0 %136
    %v139 = vmul.f32 %v132, %v137
    %141 = vrot.lane.b32.xlu0 %v139, 32
    %v142 = vpop.permute.xlu0 %141
    %v144 = vadd.f32 %v134, %v142
    %v145 = vtanh.pop %v144
    %147 = vrot.lane.b32.xlu0 %v145, 64
    %v148 = vpop.permute.xlu0 %147
    %v150 = vmul.f32 %v132, %v148
    %152 = vrot.lane.b32.xlu0 %v150, 32
    %v153 = vpop.permute.xlu0 %152
    %v154 = vsel %vm104, %v153, 0
    %156 = vmatpush.msra.mxu0 0.0
    %157 = vmatpush.msra.mxu0 0.0
    %158 = vmatpush.msra.mxu0 0.0
    %159 = vmatpush.msra.mxu0 0.0
    %160 = vmatpush.msra.mxu0 0.0
    %161 = vmatpush.msra.mxu0 0.0
    %162 = vmatpush.msra.mxu0 0.0
    %163 = vmatpush.msra.mxu0 0.0
    %164 = vmatpush.msra.mxu0 0.0
    %165 = vmatpush.msra.mxu0 0.0
    %166 = vmatpush.msra.mxu0 0.0
    %167 = vmatpush.msra.mxu0 0.0
    %168 = vmatpush.msra.mxu0 %v103
    %169 = vmatpush.msra.mxu0 %v102
    %170 = vmatpush.msra.mxu0 %v101
    %171 = vmatpush.msra.mxu0 %v100
    %172 = vmatmul.f32.gmra.mxu0 %v154
    %v173 = vpop.f32.mrf.mxu0
    %v174 = vadd.f32 0.0, %v173
    %175 = vdwg.mxu0
    %v177 = vrot.slane %v174, 7
    %v179 = vadd.f32 %v93, %v177
    %v180 = vmul.f32 %v179, 0.5
    %v181 = vtanh.pop %v180
    %v182 = vmul.f32 %v181, 0.5
    %v183 = vadd.f32 %v182, 0.5
    %v184 = vtanh.pop %v179
    %v186 = vrot.slane %v144, 7
    %v188 = vmul.f32 %v183, %v186
    %190 = vrot.lane.b32.xlu0 %v184, 64
    %v191 = vpop.permute.xlu0 %190
    %v193 = vmul.f32 %v183, %v191
    %195 = vrot.lane.b32.xlu0 %v193, 32
    %v196 = vpop.permute.xlu0 %195
    %v198 = vadd.f32 %v188, %v196
    %v199 = vtanh.pop %v198
    %201 = vrot.lane.b32.xlu0 %v199, 64
    %v202 = vpop.permute.xlu0 %201
    %v204 = vmul.f32 %v183, %v202
    %v206 = vrot.slane %v204, 1
    %207 = vrot.lane.b32.xlu0 %v206, 32
    %v208 = vpop.permute.xlu0 %207
    %v209 = vsel %vm104, %v208, 0
    %211 = vmatpush.msra.mxu0 0.0
    %212 = vmatpush.msra.mxu0 0.0
    %213 = vmatpush.msra.mxu0 0.0
    %214 = vmatpush.msra.mxu0 0.0
    %215 = vmatpush.msra.mxu0 0.0
    %216 = vmatpush.msra.mxu0 0.0
    %217 = vmatpush.msra.mxu0 0.0
    %218 = vmatpush.msra.mxu0 0.0
    %219 = vmatpush.msra.mxu0 0.0
    %220 = vmatpush.msra.mxu0 0.0
    %221 = vmatpush.msra.mxu0 0.0
    %222 = vmatpush.msra.mxu0 0.0
    %223 = vmatpush.msra.mxu0 %v103
    %224 = vmatpush.msra.mxu0 %v102
    %225 = vmatpush.msra.mxu0 %v101
    %226 = vmatpush.msra.mxu0 %v100
    %227 = vmatmul.f32.gmra.mxu0 %v209
    %v228 = vpop.f32.mrf.mxu0
    %v229 = vadd.f32 0.0, %v228
    %230 = vdwg.mxu0
    %v232 = vrot.slane %v229, 6
    %v234 = vadd.f32 %v96, %v232
    %v235 = vmul.f32 %v234, 0.5
    %v236 = vtanh.pop %v235
    %v237 = vmul.f32 %v236, 0.5
    %v238 = vadd.f32 %v237, 0.5
    %v239 = vtanh.pop %v234
    %v241 = vrot.slane %v198, 7
    %v243 = vmul.f32 %v238, %v241
    %245 = vrot.lane.b32.xlu0 %v239, 64
    %v246 = vpop.permute.xlu0 %245
    %v248 = vmul.f32 %v238, %v246
    %250 = vrot.lane.b32.xlu0 %v248, 32
    %v251 = vpop.permute.xlu0 %250
    %v253 = vadd.f32 %v243, %v251
    %v254 = vtanh.pop %v253
    %256 = vrot.lane.b32.xlu0 %v254, 64
    %v257 = vpop.permute.xlu0 %256
    %v259 = vmul.f32 %v238, %v257
    %v261 = vrot.slane %v259, 2
    %262 = vrot.lane.b32.xlu0 %v261, 32
    %v263 = vpop.permute.xlu0 %262
    %v264 = vsel %vm104, %v263, 0
    %266 = vmatpush.msra.mxu0 0.0
    %267 = vmatpush.msra.mxu0 0.0
    %268 = vmatpush.msra.mxu0 0.0
    %269 = vmatpush.msra.mxu0 0.0
    %270 = vmatpush.msra.mxu0 0.0
    %271 = vmatpush.msra.mxu0 0.0
    %272 = vmatpush.msra.mxu0 0.0
    %273 = vmatpush.msra.mxu0 0.0
    %274 = vmatpush.msra.mxu0 0.0
    %275 = vmatpush.msra.mxu0 0.0
    %276 = vmatpush.msra.mxu0 0.0
    %277 = vmatpush.msra.mxu0 0.0
    %278 = vmatpush.msra.mxu0 %v103
    %279 = vmatpush.msra.mxu0 %v102
    %280 = vmatpush.msra.mxu0 %v101
    %281 = vmatpush.msra.mxu0 %v100
    %282 = vmatmul.f32.gmra.mxu0 %v264
    %v283 = vpop.f32.mrf.mxu0
    %v284 = vadd.f32 0.0, %v283
    %285 = vdwg.mxu0
    %v287 = vrot.slane %v284, 5
    %v289 = vadd.f32 %v99, %v287
    %v290 = vmul.f32 %v289, 0.5
    %v291 = vtanh.pop %v290
    %v292 = vmul.f32 %v291, 0.5
    %v293 = vadd.f32 %v292, 0.5
    %v294 = vtanh.pop %v289
    %v296 = vrot.slane %v253, 7
    %v298 = vmul.f32 %v293, %v296
    %300 = vrot.lane.b32.xlu0 %v294, 64
    %v301 = vpop.permute.xlu0 %300
    %v303 = vmul.f32 %v293, %v301
    %305 = vrot.lane.b32.xlu0 %v303, 32
    %v306 = vpop.permute.xlu0 %305
    %v308 = vadd.f32 %v298, %v306
    %v309 = vtanh.pop %v308
    %311 = vrot.lane.b32.xlu0 %v309, 64
    %v312 = vpop.permute.xlu0 %311
    %v314 = vmul.f32 %v293, %v312
    %v316 = vrot.slane %v314, 3
    %317 = vrot.lane.b32.xlu0 %v316, 32
    %v318 = vpop.permute.xlu0 %317
    %v319 = vsel %vm104, %v318, 0
    %321 = vmatpush.msra.mxu0 0.0
    %322 = vmatpush.msra.mxu0 0.0
    %323 = vmatpush.msra.mxu0 0.0
    %324 = vmatpush.msra.mxu0 0.0
    %325 = vmatpush.msra.mxu0 0.0
    %326 = vmatpush.msra.mxu0 0.0
    %327 = vmatpush.msra.mxu0 0.0
    %328 = vmatpush.msra.mxu0 0.0
    %329 = vmatpush.msra.mxu0 0.0
    %330 = vmatpush.msra.mxu0 0.0
    %331 = vmatpush.msra.mxu0 0.0
    %332 = vmatpush.msra.mxu0 0.0
    %333 = vmatpush.msra.mxu0 %v103
    %334 = vmatpush.msra.mxu0 %v102
    %335 = vmatpush.msra.mxu0 %v101
    %336 = vmatpush.msra.mxu0 %v100
    %337 = vmatmul.f32.gmra.mxu0 %v319
    %v338 = vpop.f32.mrf.mxu0
    %v339 = vadd.f32 0.0, %v338
    %340 = vdwg.mxu0
    %v342 = vrot.slane %v339, 4
    %v344 = vadd.f32 %v90, %v342
    %v345 = vmul.f32 %v344, 0.5
    %v346 = vtanh.pop %v345
    %v347 = vmul.f32 %v346, 0.5
    %v348 = vadd.f32 %v347, 0.5
    %v349 = vtanh.pop %v344
    %v351 = vrot.slane %v308, 7
    %v353 = vmul.f32 %v348, %v351
    %355 = vrot.lane.b32.xlu0 %v349, 64
    %v356 = vpop.permute.xlu0 %355
    %v358 = vmul.f32 %v348, %v356
    %360 = vrot.lane.b32.xlu0 %v358, 32
    %v361 = vpop.permute.xlu0 %360
    %v363 = vadd.f32 %v353, %v361
    %v364 = vtanh.pop %v363
    %366 = vrot.lane.b32.xlu0 %v364, 64
    %v367 = vpop.permute.xlu0 %366
    %v369 = vmul.f32 %v348, %v367
    %v371 = vrot.slane %v369, 4
    %372 = vrot.lane.b32.xlu0 %v371, 32
    %v373 = vpop.permute.xlu0 %372
    %v374 = vsel %vm104, %v373, 0
    %376 = vmatpush.msra.mxu0 0.0
    %377 = vmatpush.msra.mxu0 0.0
    %378 = vmatpush.msra.mxu0 0.0
    %379 = vmatpush.msra.mxu0 0.0
    %380 = vmatpush.msra.mxu0 0.0
    %381 = vmatpush.msra.mxu0 0.0
    %382 = vmatpush.msra.mxu0 0.0
    %383 = vmatpush.msra.mxu0 0.0
    %384 = vmatpush.msra.mxu0 0.0
    %385 = vmatpush.msra.mxu0 0.0
    %386 = vmatpush.msra.mxu0 0.0
    %387 = vmatpush.msra.mxu0 0.0
    %388 = vmatpush.msra.mxu0 %v103
    %389 = vmatpush.msra.mxu0 %v102
    %390 = vmatpush.msra.mxu0 %v101
    %391 = vmatpush.msra.mxu0 %v100
    %392 = vmatmul.f32.gmra.mxu0 %v374
    %v393 = vpop.f32.mrf.mxu0
    %v394 = vadd.f32 0.0, %v393
    %395 = vdwg.mxu0
    %v397 = vrot.slane %v394, 3
    %v399 = vadd.f32 %v93, %v397
    %v400 = vmul.f32 %v399, 0.5
    %v401 = vtanh.pop %v400
    %v402 = vmul.f32 %v401, 0.5
    %v403 = vadd.f32 %v402, 0.5
    %v404 = vtanh.pop %v399
    %v406 = vrot.slane %v363, 7
    %v408 = vmul.f32 %v403, %v406
    %410 = vrot.lane.b32.xlu0 %v404, 64
    %v411 = vpop.permute.xlu0 %410
    %v413 = vmul.f32 %v403, %v411
    %415 = vrot.lane.b32.xlu0 %v413, 32
    %v416 = vpop.permute.xlu0 %415
    %v418 = vadd.f32 %v408, %v416
    %v419 = vtanh.pop %v418
    %421 = vrot.lane.b32.xlu0 %v419, 64
    %v422 = vpop.permute.xlu0 %421
    %v424 = vmul.f32 %v403, %v422
    %v426 = vrot.slane %v424, 5
    %427 = vrot.lane.b32.xlu0 %v426, 32
    %v428 = vpop.permute.xlu0 %427
    %v429 = vsel %vm104, %v428, 0
    %431 = vmatpush.msra.mxu0 0.0
    %432 = vmatpush.msra.mxu0 0.0
    %433 = vmatpush.msra.mxu0 0.0
    %434 = vmatpush.msra.mxu0 0.0
    %435 = vmatpush.msra.mxu0 0.0
    %436 = vmatpush.msra.mxu0 0.0
    %437 = vmatpush.msra.mxu0 0.0
    %438 = vmatpush.msra.mxu0 0.0
    %439 = vmatpush.msra.mxu0 0.0
    %440 = vmatpush.msra.mxu0 0.0
    %441 = vmatpush.msra.mxu0 0.0
    %442 = vmatpush.msra.mxu0 0.0
    %443 = vmatpush.msra.mxu0 %v103
    %444 = vmatpush.msra.mxu0 %v102
    %445 = vmatpush.msra.mxu0 %v101
    %446 = vmatpush.msra.mxu0 %v100
    %447 = vmatmul.f32.gmra.mxu0 %v429
    %v448 = vpop.f32.mrf.mxu0
    %v449 = vadd.f32 0.0, %v448
    %450 = vdwg.mxu0
    %v452 = vrot.slane %v449, 2
    %v454 = vadd.f32 %v96, %v452
    %v455 = vmul.f32 %v454, 0.5
    %v456 = vtanh.pop %v455
    %v457 = vmul.f32 %v456, 0.5
    %v458 = vadd.f32 %v457, 0.5
    %v459 = vtanh.pop %v454
    %v461 = vrot.slane %v418, 7
    %v463 = vmul.f32 %v458, %v461
    %465 = vrot.lane.b32.xlu0 %v459, 64
    %v466 = vpop.permute.xlu0 %465
    %v468 = vmul.f32 %v458, %v466
    %470 = vrot.lane.b32.xlu0 %v468, 32
    %v471 = vpop.permute.xlu0 %470
    %v473 = vadd.f32 %v463, %v471
    %v474 = vtanh.pop %v473
    %476 = vrot.lane.b32.xlu0 %v474, 64
    %v477 = vpop.permute.xlu0 %476
    %v479 = vmul.f32 %v458, %v477
    %v481 = vrot.slane %v479, 6
    %482 = vrot.lane.b32.xlu0 %v481, 32
    %v483 = vpop.permute.xlu0 %482
    %v484 = vsel %vm104, %v483, 0
    %486 = vmatpush.msra.mxu0 0.0
    %487 = vmatpush.msra.mxu0 0.0
    %488 = vmatpush.msra.mxu0 0.0
    %489 = vmatpush.msra.mxu0 0.0
    %490 = vmatpush.msra.mxu0 0.0
    %491 = vmatpush.msra.mxu0 0.0
    %492 = vmatpush.msra.mxu0 0.0
    %493 = vmatpush.msra.mxu0 0.0
    %494 = vmatpush.msra.mxu0 0.0
    %495 = vmatpush.msra.mxu0 0.0
    %496 = vmatpush.msra.mxu0 0.0
    %497 = vmatpush.msra.mxu0 0.0
    %498 = vmatpush.msra.mxu0 %v103
    %499 = vmatpush.msra.mxu0 %v102
    %500 = vmatpush.msra.mxu0 %v101
    %501 = vmatpush.msra.mxu0 %v100
    %502 = vmatmul.f32.gmra.mxu0 %v484
    %v503 = vpop.f32.mrf.mxu0
    %v504 = vadd.f32 0.0, %v503
    %505 = vdwg.mxu0
    %v507 = vrot.slane %v504, 1
    %v509 = vadd.f32 %v99, %v507
    %v510 = vmul.f32 %v509, 0.5
    %v511 = vtanh.pop %v510
    %v512 = vmul.f32 %v511, 0.5
    %v513 = vadd.f32 %v512, 0.5
    %v514 = vtanh.pop %v509
    %v516 = vrot.slane %v473, 7
    %v518 = vmul.f32 %v513, %v516
    %520 = vrot.lane.b32.xlu0 %v514, 64
    %v521 = vpop.permute.xlu0 %520
    %v523 = vmul.f32 %v513, %v521
    %525 = vrot.lane.b32.xlu0 %v523, 32
    %v526 = vpop.permute.xlu0 %525
    %v528 = vadd.f32 %v518, %v526
    %v529 = vtanh.pop %v528
    %531 = vrot.lane.b32.xlu0 %v529, 64
    %v532 = vpop.permute.xlu0 %531
    %v534 = vmul.f32 %v513, %v532
    %vm535 = vcmask 1040384
    %v536 = vsel %vm535, %v150, %v204
    %vm537 = vcmask 1041408
    %v538 = vsel %vm537, %v536, %v259
    %vm539 = vcmask 1042432
    %v540 = vsel %vm539, %v538, %v314
    %vm541 = vcmask 1043456
    %v542 = vsel %vm541, %v540, %v369
    %vm543 = vcmask 1044480
    %v544 = vsel %vm543, %v542, %v424
    %vm545 = vcmask 1045504
    %v546 = vsel %vm545, %v544, %v479
    %vm547 = vcmask 1046528
    %v548 = vsel %vm547, %v546, %v534
    %v550 = vrot.slane %v534, 7
    %v552 = vrot.slane %v479, 5
    %v554 = vrot.slane %v424, 3
    %v556 = vrot.slane %v369, 1
    %v558 = vrot.slane %v314, 7
    %v560 = vrot.slane %v259, 5
    %v562 = vrot.slane %v204, 3
    %v564 = vrot.slane %v150, 1
    %v566 = vsel %vm535, %v550, %v552
    %v567 = vsel %vm537, %v566, %v554
    %v568 = vsel %vm539, %v567, %v556
    %v569 = vsel %vm541, %v568, %v558
    %v570 = vsel %vm543, %v569, %v560
    %v571 = vsel %vm545, %v570, %v562
    %v572 = vsel %vm547, %v571, %v564
    %v573 = vld [vmem:[%s3] sm:$0xff]
    %v574 = vld [vmem:[%s3 + $0x8] sm:$0xff]
    %v575 = vld [vmem:[%s3 + $0x10] sm:$0xff]
    %v576 = vld [vmem:[%s3 + $0x18] sm:$0xff]
    %v577 = vld [vmem:[%s3 + $0x20] sm:$0x1]
    %579 = vrot.lane.b32.xlu0 %v572, 16
    %v580 = vpop.permute.xlu0 %579
    %vm581 = vcmask 130048
    %v582 = vsel %vm581, %v580, 0
    %584 = vmatpush.msra.mxu0 0.0
    %585 = vmatpush.msra.mxu0 0.0
    %586 = vmatpush.msra.mxu0 0.0
    %587 = vmatpush.msra.mxu0 0.0
    %588 = vmatpush.msra.mxu0 0.0
    %589 = vmatpush.msra.mxu0 0.0
    %590 = vmatpush.msra.mxu0 0.0
    %591 = vmatpush.msra.mxu0 0.0
    %592 = vmatpush.msra.mxu0 0.0
    %593 = vmatpush.msra.mxu0 0.0
    %594 = vmatpush.msra.mxu0 0.0
    %595 = vmatpush.msra.mxu0 0.0
    %596 = vmatpush.msra.mxu0 0.0
    %597 = vmatpush.msra.mxu0 0.0
    %598 = vmatpush.msra.mxu0 %v576
    %599 = vmatpush.msra.mxu0 %v575
    %600 = vmatmul.f32.gmra.mxu0 %v582
    %v601 = vpop.f32.mrf.mxu0
    %v602 = vadd.f32 0.0, %v601
    %603 = vdwg.mxu0
    %605 = vrot.lane.b32.xlu0 %v548, 32
    %v606 = vpop.permute.xlu0 %605
    %v607 = vsel %vm581, %v606, 0
    %609 = vmatpush.msra.mxu0 0.0
    %610 = vmatpush.msra.mxu0 0.0
    %611 = vmatpush.msra.mxu0 0.0
    %612 = vmatpush.msra.mxu0 0.0
    %613 = vmatpush.msra.mxu0 0.0
    %614 = vmatpush.msra.mxu0 0.0
    %615 = vmatpush.msra.mxu0 0.0
    %616 = vmatpush.msra.mxu0 0.0
    %617 = vmatpush.msra.mxu0 0.0
    %618 = vmatpush.msra.mxu0 0.0
    %619 = vmatpush.msra.mxu0 0.0
    %620 = vmatpush.msra.mxu0 0.0
    %621 = vmatpush.msra.mxu0 0.0
    %622 = vmatpush.msra.mxu0 0.0
    %623 = vmatpush.msra.mxu0 %v574
    %624 = vmatpush.msra.mxu0 %v573
    %625 = vmatmul.f32.gmra.mxu0 %v607
    %v626 = vpop.f32.mrf.mxu0
    %v627 = vadd.f32 %v602, %v626
    %628 = vdwg.mxu0
    %v629 = vperm.slane %v577, 0
    %v630 = vadd.f32 %v627, %v629
    %vm631 = vcmask 56320
    %632 = vst.msk [vmem:[#allocation5] sm:$0xff] %vm631, %v630
    %v633 = vld [vmem:[%s3 + $0x21] sm:$0x7f]
    %v634 = vld [vmem:[%s3 + $0x28] sm:$0x7f]
    %v635 = vld [vmem:[%s3 + $0x2f] sm:$0x1]
    %v636 = vlaneseq
    %v637 = vshrl.u32 %v636, 7
    %v638 = vlaneseq
    %v639 = vand.u32 %v638, 127
    %vm640 = vcmp.eq.s32.totalorder %v637, %v639
    %v641 = vperm.slane %v630, 0
    %v642 = vadd.f32 %v633, %v641
    %v643 = vperm.slane %v630, 1
    %v644 = vsel %vm640, %v643, 0.0
    %vm645 = vcmask 55296
    %v646 = vsel %vm645, %v644, 0.0
    %647 = vadd.xlane.f32.xlu0 %v646
    %v648 = vpop.xlane.xlu0 %647
    %v649 = vadd.f32 %v634, %v648
    %v650 = vperm.slane %v630, 2
    %v651 = vadd.f32 %v633, %v650
    %v652 = vperm.slane %v630, 3
    %v653 = vsel %vm640, %v652, 0.0
    %v654 = vsel %vm645, %v653, 0.0
    %655 = vadd.xlane.f32.xlu0 %v654
    %v656 = vpop.xlane.xlu0 %655
    %v657 = vadd.f32 %v634, %v656
    %v658 = vperm.slane %v630, 4
    %v659 = vadd.f32 %v633, %v658
    %v660 = vperm.slane %v630, 5
    %v661 = vsel %vm640, %v660, 0.0
    %v662 = vsel %vm645, %v661, 0.0
    %663 = vadd.xlane.f32.xlu0 %v662
    %v664 = vpop.xlane.xlu0 %663
    %v665 = vadd.f32 %v634, %v664
    %v666 = vperm.slane %v630, 6
    %v667 = vadd.f32 %v633, %v666
    %v668 = vperm.slane %v630, 7
    %v669 = vsel %vm640, %v668, 0.0
    %v670 = vsel %vm645, %v669, 0.0
    %671 = vadd.xlane.f32.xlu0 %v670
    %v672 = vpop.xlane.xlu0 %671
    %v673 = vadd.f32 %v634, %v672
    %vm674 = vcmp.eq.s32.totalorder %v637, 5
    %v675 = vsel %vm674, 0.0, -10000.0
    %v676 = vadd.f32 %v675, %v642
    %v677 = vsel %vm645, %v676, -inf
    %v678 = vrot.slane %v677, 4
    %v679 = vmax.f32 %v677, %v678
    %v680 = vrot.slane %v679, 2
    %v681 = vmax.f32 %v679, %v680
    %v682 = vrot.slane %v681, 1
    %v683 = vmax.f32 %v681, %v682
    %vm684 = vcmp.eq.f32.partialorder %v676, %v683
    %v685 = vsel %vm684, %v637, 7
    %v686 = vsel %vm645, %v685, 2147483647
    %v687 = vrot.slane %v686, 4
    %vm688 = vcmp.lt.s32.totalorder %v686, %v687
    %v689 = vsel %vm688, %v686, %v687
    %v690 = vrot.slane %v689, 2
    %vm691 = vcmp.lt.s32.totalorder %v689, %v690
    %v692 = vsel %vm691, %v689, %v690
    %v693 = vrot.slane %v692, 1
    %vm694 = vcmp.lt.s32.totalorder %v692, %v693
    %v695 = vsel %vm694, %v692, %v693
    %v696 = vadd.f32 %v683, %v649
    %v697 = vsel %vm645, %v696, -inf
    %698 = vmax.xlane.f32.xlu0 %v697
    %v699 = vpop.xlane.xlu0 %698
    %vm700 = vcmp.eq.f32.partialorder %v696, %v699
    %v701 = vsel %vm700, %v639, 7
    %v702 = vsel %vm645, %v701, 2147483647
    %v703 = vand.u32 %v702, 65535
    %v704 = vshra.s32 %v702, 16
    %v705 = vcvt.s32.f32 %v703
    %v706 = vcvt.s32.f32 %v704
    %707 = vmin.xlane.f32.xlu0 %v706
    %v708 = vpop.xlane.xlu0 %707
    %vm709 = vcmp.eq.f32.partialorder %v706, %v708
    %v710 = vsel %vm709, %v705, inf
    %711 = vmin.xlane.f32.xlu0 %v710
    %v712 = vpop.xlane.xlu0 %711
    %v713 = vcvt.f32.s32 %v712
    %v714 = vcvt.f32.s32 %v708
    %v715 = vshll.u32 %v714, 16
    %v716 = vadd.s32 %v715, %v713
    %v717 = vadd.f32 %v699, %v651
    %v718 = vsel %vm645, %v717, -inf
    %v719 = vrot.slane %v718, 4
    %v720 = vmax.f32 %v718, %v719
    %v721 = vrot.slane %v720, 2
    %v722 = vmax.f32 %v720, %v721
    %v723 = vrot.slane %v722, 1
    %v724 = vmax.f32 %v722, %v723
    %vm725 = vcmp.eq.f32.partialorder %v717, %v724
    %v726 = vsel %vm725, %v637, 7
    %v727 = vsel %vm645, %v726, 2147483647
    %v728 = vrot.slane %v727, 4
    %vm729 = vcmp.lt.s32.totalorder %v727, %v728
    %v730 = vsel %vm729, %v727, %v728
    %v731 = vrot.slane %v730, 2
    %vm732 = vcmp.lt.s32.totalorder %v730, %v731
    %v733 = vsel %vm732, %v730, %v731
    %v734 = vrot.slane %v733, 1
    %vm735 = vcmp.lt.s32.totalorder %v733, %v734
    %v736 = vsel %vm735, %v733, %v734
    %v737 = vadd.f32 %v724, %v657
    %v738 = vsel %vm645, %v737, -inf
    %739 = vmax.xlane.f32.xlu0 %v738
    %v740 = vpop.xlane.xlu0 %739
    %vm741 = vcmp.eq.f32.partialorder %v737, %v740
    %v742 = vsel %vm741, %v639, 7
    %v743 = vsel %vm645, %v742, 2147483647
    %v744 = vand.u32 %v743, 65535
    %v745 = vshra.s32 %v743, 16
    %v746 = vcvt.s32.f32 %v744
    %v747 = vcvt.s32.f32 %v745
    %748 = vmin.xlane.f32.xlu0 %v747
    %v749 = vpop.xlane.xlu0 %748
    %vm750 = vcmp.eq.f32.partialorder %v747, %v749
    %v751 = vsel %vm750, %v746, inf
    %752 = vmin.xlane.f32.xlu0 %v751
    %v753 = vpop.xlane.xlu0 %752
    %v754 = vcvt.f32.s32 %v753
    %v755 = vcvt.f32.s32 %v749
    %v756 = vshll.u32 %v755, 16
    %v757 = vadd.s32 %v756, %v754
    %v758 = vadd.f32 %v740, %v659
    %v759 = vsel %vm645, %v758, -inf
    %v760 = vrot.slane %v759, 4
    %v761 = vmax.f32 %v759, %v760
    %v762 = vrot.slane %v761, 2
    %v763 = vmax.f32 %v761, %v762
    %v764 = vrot.slane %v763, 1
    %v765 = vmax.f32 %v763, %v764
    %vm766 = vcmp.eq.f32.partialorder %v758, %v765
    %v767 = vsel %vm766, %v637, 7
    %v768 = vsel %vm645, %v767, 2147483647
    %v769 = vrot.slane %v768, 4
    %vm770 = vcmp.lt.s32.totalorder %v768, %v769
    %v771 = vsel %vm770, %v768, %v769
    %v772 = vrot.slane %v771, 2
    %vm773 = vcmp.lt.s32.totalorder %v771, %v772
    %v774 = vsel %vm773, %v771, %v772
    %v775 = vrot.slane %v774, 1
    %vm776 = vcmp.lt.s32.totalorder %v774, %v775
    %v777 = vsel %vm776, %v774, %v775
    %v778 = vadd.f32 %v765, %v665
    %v779 = vsel %vm645, %v778, -inf
    %780 = vmax.xlane.f32.xlu0 %v779
    %v781 = vpop.xlane.xlu0 %780
    %vm782 = vcmp.eq.f32.partialorder %v778, %v781
    %v783 = vsel %vm782, %v639, 7
    %v784 = vsel %vm645, %v783, 2147483647
    %v785 = vand.u32 %v784, 65535
    %v786 = vshra.s32 %v784, 16
    %v787 = vcvt.s32.f32 %v785
    %v788 = vcvt.s32.f32 %v786
    %789 = vmin.xlane.f32.xlu0 %v788
    %v790 = vpop.xlane.xlu0 %789
    %vm791 = vcmp.eq.f32.partialorder %v788, %v790
    %v792 = vsel %vm791, %v787, inf
    %793 = vmin.xlane.f32.xlu0 %v792
    %v794 = vpop.xlane.xlu0 %793
    %v795 = vcvt.f32.s32 %v794
    %v796 = vcvt.f32.s32 %v790
    %v797 = vshll.u32 %v796, 16
    %v798 = vadd.s32 %v797, %v795
    %v799 = vadd.f32 %v781, %v667
    %v800 = vsel %vm645, %v799, -inf
    %v801 = vrot.slane %v800, 4
    %v802 = vmax.f32 %v800, %v801
    %v803 = vrot.slane %v802, 2
    %v804 = vmax.f32 %v802, %v803
    %v805 = vrot.slane %v804, 1
    %v806 = vmax.f32 %v804, %v805
    %vm807 = vcmp.eq.f32.partialorder %v799, %v806
    %v808 = vsel %vm807, %v637, 7
    %v809 = vsel %vm645, %v808, 2147483647
    %v810 = vrot.slane %v809, 4
    %vm811 = vcmp.lt.s32.totalorder %v809, %v810
    %v812 = vsel %vm811, %v809, %v810
    %v813 = vrot.slane %v812, 2
    %vm814 = vcmp.lt.s32.totalorder %v812, %v813
    %v815 = vsel %vm814, %v812, %v813
    %v816 = vrot.slane %v815, 1
    %vm817 = vcmp.lt.s32.totalorder %v815, %v816
    %v818 = vsel %vm817, %v815, %v816
    %v819 = vadd.f32 %v806, %v673
    %v820 = vsel %vm645, %v819, -inf
    %821 = vmax.xlane.f32.xlu0 %v820
    %v822 = vpop.xlane.xlu0 %821
    %vm823 = vcmp.eq.f32.partialorder %v819, %v822
    %v824 = vsel %vm823, %v639, 7
    %v825 = vsel %vm645, %v824, 2147483647
    %v826 = vand.u32 %v825, 65535
    %v827 = vshra.s32 %v825, 16
    %v828 = vcvt.s32.f32 %v826
    %v829 = vcvt.s32.f32 %v827
    %830 = vmin.xlane.f32.xlu0 %v829
    %v831 = vpop.xlane.xlu0 %830
    %vm832 = vcmp.eq.f32.partialorder %v829, %v831
    %v833 = vsel %vm832, %v828, inf
    %834 = vmin.xlane.f32.xlu0 %v833
    %v835 = vpop.xlane.xlu0 %834
    %v836 = vcvt.f32.s32 %v835
    %v837 = vcvt.f32.s32 %v831
    %v838 = vshll.u32 %v837, 16
    %v839 = vadd.s32 %v838, %v836
    %v840 = vperm.slane %v635, 0
    %v841 = vsel %vm640, %v840, 0.0
    %v842 = vsel %vm645, %v841, 0.0
    %843 = vadd.xlane.f32.xlu0 %v842
    %v844 = vpop.xlane.xlu0 %843
    %v845 = vadd.f32 %v822, %v844
    %v846 = vsel %vm547, %v845, -inf
    %v847 = vrot.slane %v846, 4
    %v848 = vmax.f32 %v846, %v847
    %v849 = vrot.slane %v848, 2
    %v850 = vmax.f32 %v848, %v849
    %v851 = vrot.slane %v850, 1
    %v852 = vmax.f32 %v850, %v851
    %vm853 = vcmp.eq.f32.partialorder %v845, %v852
    %v854 = vsel %vm853, %v637, 7
    %v855 = vsel %vm547, %v854, 2147483647
    %v856 = vrot.slane %v855, 4
    %vm857 = vcmp.lt.s32.totalorder %v855, %v856
    %v858 = vsel %vm857, %v855, %v856
    %v859 = vrot.slane %v858, 2
    %vm860 = vcmp.lt.s32.totalorder %v858, %v859
    %v861 = vsel %vm860, %v858, %v859
    %v862 = vrot.slane %v861, 1
    %vm863 = vcmp.lt.s32.totalorder %v861, %v862
    %v864 = vsel %vm863, %v861, %v862
    %vm865 = vcmp.eq.s32.totalorder %v637, %v864
    %v866 = vsel %vm865, %v839, 0
    %v867 = vsel %vm547, %v866, 0
    %v868 = vrot.slane %v867, 4
    %v869 = vadd.s32 %v867, %v868
    %v870 = vrot.slane %v869, 2
    %v871 = vadd.s32 %v869, %v870
    %v872 = vrot.slane %v871, 1
    %v873 = vadd.s32 %v871, %v872
    %vm874 = vcmp.eq.s32.totalorder %v639, %v873
    %v875 = vsel %vm874, %v818, 0
    %v876 = vsel %vm631, %v875, 0
    %v877 = vand.u32 %v876, 65535
    %v878 = vshrl.u32 %v876, 16
    %v879 = vcvt.s32.f32 %v877
    %v880 = vcvt.s32.f32 %v878
    %881 = vadd.xlane.f32.xlu0 %v879
    %v882 = vpop.xlane.xlu0 %881
    %883 = vadd.xlane.f32.xlu0 %v880
    %v884 = vpop.xlane.xlu0 %883
    %v885 = vcvt.f32.s32 %v882
    %v886 = vcvt.f32.s32 %v884
    %v887 = vshll.u32 %v886, 16
    %v888 = vadd.s32 %v887, %v885
    %vm889 = vcmp.eq.s32.totalorder %v637, %v888
    %v890 = vsel %vm889, %v798, 0
    %v891 = vsel %vm547, %v890, 0
    %v892 = vrot.slane %v891, 4
    %v893 = vadd.s32 %v891, %v892
    %v894 = vrot.slane %v893, 2
    %v895 = vadd.s32 %v893, %v894
    %v896 = vrot.slane %v895, 1
    %v897 = vadd.s32 %v895, %v896
    %vm898 = vcmp.eq.s32.totalorder %v639, %v897
    %v899 = vsel %vm898, %v777, 0
    %v900 = vsel %vm631, %v899, 0
    %v901 = vand.u32 %v900, 65535
    %v902 = vshrl.u32 %v900, 16
    %v903 = vcvt.s32.f32 %v901
    %v904 = vcvt.s32.f32 %v902
    %905 = vadd.xlane.f32.xlu0 %v903
    %v906 = vpop.xlane.xlu0 %905
    %907 = vadd.xlane.f32.xlu0 %v904
    %v908 = vpop.xlane.xlu0 %907
    %v909 = vcvt.f32.s32 %v906
    %v910 = vcvt.f32.s32 %v908
    %v911 = vshll.u32 %v910, 16
    %v912 = vadd.s32 %v911, %v909
    %vm913 = vcmp.eq.s32.totalorder %v637, %v912
    %v914 = vsel %vm913, %v757, 0
    %v915 = vsel %vm547, %v914, 0
    %v916 = vrot.slane %v915, 4
    %v917 = vadd.s32 %v915, %v916
    %v918 = vrot.slane %v917, 2
    %v919 = vadd.s32 %v917, %v918
    %v920 = vrot.slane %v919, 1
    %v921 = vadd.s32 %v919, %v920
    %vm922 = vcmp.eq.s32.totalorder %v639, %v921
    %v923 = vsel %vm922, %v736, 0
    %v924 = vsel %vm631, %v923, 0
    %v925 = vand.u32 %v924, 65535
    %v926 = vshrl.u32 %v924, 16
    %v927 = vcvt.s32.f32 %v925
    %v928 = vcvt.s32.f32 %v926
    %929 = vadd.xlane.f32.xlu0 %v927
    %v930 = vpop.xlane.xlu0 %929
    %931 = vadd.xlane.f32.xlu0 %v928
    %v932 = vpop.xlane.xlu0 %931
    %v933 = vcvt.f32.s32 %v930
    %v934 = vcvt.f32.s32 %v932
    %v935 = vshll.u32 %v934, 16
    %v936 = vadd.s32 %v935, %v933
    %vm937 = vcmp.eq.s32.totalorder %v637, %v936
    %v938 = vsel %vm937, %v716, 0
    %v939 = vsel %vm547, %v938, 0
    %v940 = vrot.slane %v939, 4
    %v941 = vadd.s32 %v939, %v940
    %v942 = vrot.slane %v941, 2
    %v943 = vadd.s32 %v941, %v942
    %v944 = vrot.slane %v943, 1
    %v945 = vadd.s32 %v943, %v944
    %vm946 = vcmp.eq.s32.totalorder %v639, %v945
    %v947 = vsel %vm946, %v695, 0
    %v948 = vsel %vm631, %v947, 0
    %v949 = vand.u32 %v948, 65535
    %v950 = vshrl.u32 %v948, 16
    %v951 = vcvt.s32.f32 %v949
    %v952 = vcvt.s32.f32 %v950
    %953 = vadd.xlane.f32.xlu0 %v951
    %v954 = vpop.xlane.xlu0 %953
    %955 = vadd.xlane.f32.xlu0 %v952
    %v956 = vpop.xlane.xlu0 %955
    %v957 = vcvt.f32.s32 %v954
    %v958 = vcvt.f32.s32 %v956
    %v959 = vshll.u32 %v958, 16
    %v960 = vadd.s32 %v959, %v957
    %vm961 = vcmp.eq.s32.totalorder %v639, 0
    %v962 = vsel %vm961, %v945, 0
    %vm963 = vcmp.eq.s32.totalorder %v639, 1
    %v964 = vsel %vm963, %v936, 0
    %v965 = vadd.s32 %v962, %v964
    %vm966 = vcmp.eq.s32.totalorder %v639, 2
    %v967 = vsel %vm966, %v921, 0
    %v968 = vadd.s32 %v965, %v967
    %vm969 = vcmp.eq.s32.totalorder %v639, 3
    %v970 = vsel %vm969, %v912, 0
    %v971 = vadd.s32 %v968, %v970
    %vm972 = vcmp.eq.s32.totalorder %v639, 4
    %v973 = vsel %vm972, %v897, 0
    %v974 = vadd.s32 %v971, %v973
    %vm975 = vcmp.eq.s32.totalorder %v639, 5
    %v976 = vsel %vm975, %v888, 0
    %v977 = vadd.s32 %v974, %v976
    %vm978 = vcmp.eq.s32.totalorder %v639, 6
    %v979 = vsel %vm978, %v873, 0
    %v980 = vadd.s32 %v977, %v979
    %vm981 = vcmp.eq.s32.totalorder %v639, 7
    %v982 = vsel %vm981, %v864, 0
    %v983 = vadd.s32 %v980, %v982
    %vm984 = vcmask 57344
    %985 = vst.msk [vmem:[#allocation6] sm:$0x1] %vm984, %v983
    %vm986 = vcmask 0
    %987 = vst.msk [vmem:[#allocation8] sm:$0x1] %vm986, %v852
    %988 = vst.msk [vmem:[#allocation9] sm:$0x1] %vm986, %v960
    // Predicated region
    $region22: #{tpu_custom_call.1} parent=1 // pred_check
      _
    $region23: #{tpu_custom_call.1} parent=1 // pred_check_branch
      %990 = sbr.rel (0) target = $region25
    $region24: #{tpu_custom_call.1} parent=1 // pred_region
      %992 = vsyncadd [#allocation4], 0
      %s994 = sshll.u32 [#allocation5], 4
      %s995 = int_to_ptr.vmem [resolvable:$true] %s994
      %s996 = sshll.u32 %s4, 4
      %s997 = int_to_ptr.hbm [resolvable:$true] %s996
      %999 = dma.vmem_to_hbm [thread:$0]  %s995, 128, %s997, [#allocation4]
    $region25: #{tpu_custom_call.1} parent=1 // pred_fallthru
      _
    // Predicated region
    $region26: #{tpu_custom_call.1} parent=1 // pred_check
      _
    $region27: #{tpu_custom_call.1} parent=1 // pred_check_branch
      %1001 = sbr.rel (0) target = $region29
    $region28: #{tpu_custom_call.1} parent=1 // pred_region
      %1003 = vsyncadd [#allocation7], 0
      %s1005 = sshll.u32 [#allocation6], 4
      %s1006 = int_to_ptr.vmem [resolvable:$true] %s1005
      %s1007 = sshll.u32 %s5, 4
      %s1008 = int_to_ptr.hbm [resolvable:$true] %s1007
      %1010 = dma.vmem_to_hbm [thread:$0]  %s1006, 16, %s1008, [#allocation7]
    $region29: #{tpu_custom_call.1} parent=1 // pred_fallthru
      _
    // Predicated region
    $region30: #{tpu_custom_call.1} parent=1 // pred_check
      _
    $region31: #{tpu_custom_call.1} parent=1 // pred_check_branch
      %1012 = sbr.rel (0) target = $region33
    $region32: #{tpu_custom_call.1} parent=1 // pred_region
      %1014 = vsyncadd [#allocation7], 0
      %s1016 = sshll.u32 [#allocation8], 4
      %s1017 = int_to_ptr.vmem [resolvable:$true] %s1016
      %s1018 = sshll.u32 %s6, 4
      %s1019 = int_to_ptr.hbm [resolvable:$true] %s1018
      %1021 = dma.vmem_to_hbm [thread:$0]  %s1017, 16, %s1019, [#allocation7]
    $region33: #{tpu_custom_call.1} parent=1 // pred_fallthru
      _
    // Predicated region
    $region34: #{tpu_custom_call.1} parent=1 // pred_check
      _
    $region35: #{tpu_custom_call.1} parent=1 // pred_check_branch
      %1023 = sbr.rel (0) target = $region37
    $region36: #{tpu_custom_call.1} parent=1 // pred_region
      %1025 = vsyncadd [#allocation10], 0
      %s1027 = sshll.u32 [#allocation9], 4
      %s1028 = int_to_ptr.vmem [resolvable:$true] %s1027
      %s1029 = sshll.u32 %s7, 4
      %s1030 = int_to_ptr.hbm [resolvable:$true] %s1029
      %1032 = dma.vmem_to_hbm [thread:$0]  %s1028, 16, %s1030, [#allocation10]
    $region37: #{tpu_custom_call.1} parent=1 // pred_fallthru
      _
    // Predicated region
    $region38: #{tpu_custom_call.1} parent=1 // pred_check
      _
    $region39: #{tpu_custom_call.1} parent=1 // pred_check_branch
      %1034 = sbr.rel (0) target = $region41
    $region40: #{tpu_custom_call.1} parent=1 // pred_region
      %1036 = dma.done [#allocation4], 128
    $region41: #{tpu_custom_call.1} parent=1 // pred_fallthru
      _
    // Predicated region
    $region42: #{tpu_custom_call.1} parent=1 // pred_check
      _
    $region43: #{tpu_custom_call.1} parent=1 // pred_check_branch
      %1038 = sbr.rel (0) target = $region45
    $region44: #{tpu_custom_call.1} parent=1 // pred_region
      %1040 = dma.done [#allocation7], 16
    $region45: #{tpu_custom_call.1} parent=1 // pred_fallthru
      _
    // Predicated region
    $region46: #{tpu_custom_call.1} parent=1 // pred_check
      _
    $region47: #{tpu_custom_call.1} parent=1 // pred_check_branch
      %1042 = sbr.rel (0) target = $region49
    $region48: #{tpu_custom_call.1} parent=1 // pred_region
      %1044 = dma.done [#allocation7], 16
    $region49: #{tpu_custom_call.1} parent=1 // pred_fallthru
      _
    // Predicated region
    $region50: #{tpu_custom_call.1} parent=1 // pred_check
      _
    $region51: #{tpu_custom_call.1} parent=1 // pred_check_branch
      %1046 = sbr.rel (0) target = $region53
    $region52: #{tpu_custom_call.1} parent=1 // pred_region
      %1048 = dma.done [#allocation10], 16
    $region53: #{tpu_custom_call.1} parent=1 // pred_fallthru
      _
    %1049 = vsyncpa [#allocation3], 1
    %1050 = vsyncpa [#allocation4], 1
    %1051 = vsyncpa [#allocation7], 1
    %1052 = vsyncpa [#allocation10], 1

</llo_original>
